<compile_context>
chip_gen: v7x
topology: tpu7x:2x2x1
jax: 0.10.0
libtpu: 0.0.40
codegen_flags: <defaults>
</compile_context>

<pallas_src>
import jax
import jax.numpy as jnp
from jax import lax
from jax.experimental import pallas as pl
from jax.experimental.pallas import tpu as pltpu


def cadre_kernel(idx_ref,    # VMEM (TB*K, 1) int32   gene indices for this block
                 gt_ref,     # VMEM (NGp, D)  bf16    gene_table @ Wt.T + b   (resident)
                 tab_ref,    # VMEM (NGp, D)  bf16    raw gene_table          (resident)
                 plin_ref,   # VMEM (TB, D)   f32     pathway_emb @ Wt.T      (per block)
                 drug_ref,   # VMEM (TB, D)   f32     drug rows               (per block)
                 wq_ref,     # VMEM (1, D)    f32     attn_query weight       (resident)
                 out_ref):   # VMEM (1, 1, TB) f32    sigmoid predictions (lane-dense)
    TBK = idx_ref.shape[0]
    TB, D = plin_ref.shape
    K = TBK // TB
    NG = gt_ref.shape[0]

    # ---- one-hot "gather" of the pre-transformed gene rows on the MXU.
    # TODO(synk): for gene tables too large for VMEM, switch to a manual DMA
    # row gather (memory_space=pl.ANY + pltpu.make_async_copy) instead of the
    # one-hot matmul.
    idx = idx_ref[...]                                              # (TBK, 1) i32
    cols = lax.broadcasted_iota(jnp.int32, (TBK, NG), 1)
    onehot = (idx == cols).astype(jnp.bfloat16)                     # (TBK, NG)

    gpre = jnp.dot(onehot, gt_ref[...],
                   preferred_element_type=jnp.float32)              # (TBK, D) f32
    # TODO(synk): at production TB*K, split this matmul + tanh + score stage
    # into 256-512 row slabs so MXU / EUP / XLU phases overlap.
    h = jnp.tanh(gpre.reshape(TB, K, D) + plin_ref[...][:, None, :])

    # ---- attention scores + softmax over K (query bias cancels in softmax).
    scores = jnp.sum(h * wq_ref[...][None, :, :], axis=-1)          # (TB, K)
    m = jnp.max(scores, axis=-1, keepdims=True)
    e = jnp.exp(scores - m)
    attn = e * pl.reciprocal(jnp.sum(e, axis=-1, keepdims=True), approx=True)

    # ---- context = (attention-weighted one-hot) @ raw table (second MXU op).
    w_oh = jnp.sum(attn[:, :, None] * onehot.reshape(TB, K, NG).astype(jnp.float32),
                   axis=1)                                           # (TB, NG) f32
    context = jnp.dot(w_oh.astype(jnp.bfloat16), tab_ref[...],
                      preferred_element_type=jnp.float32)            # (TB, D) f32
    # TODO(synk): nn.Dropout(p) on context omitted — inference identity.

    dot = jnp.sum(context * drug_ref[...], axis=-1, keepdims=True)   # (TB, 1)
    sig = jax.nn.sigmoid(dot)

    # ---- lane-dense store: move the per-row scalars onto lanes with a cheap
    # mask + sublane-reduce (avoids 1-lane masked vst / 1-lane writeback DMA).
    rows = lax.broadcasted_iota(jnp.int32, (TB, TB), 0)
    cols2 = lax.broadcasted_iota(jnp.int32, (TB, TB), 1)
    row = jnp.sum(jnp.where(rows == cols2, sig, 0.0), axis=0, keepdims=True)
    out_ref[...] = row[None]                                          # (1, 1, TB)


def _round_up(x, m):
    return (x + m - 1) // m * m


def _vmem_capacity_bytes():
    try:
        return int(pltpu.get_tpu_info().vmem_capacity_bytes)
    except Exception:
        return 64 * 1024 * 1024          # v7x-safe fallback


def _pick_tb(B, K, D, NGp, vmem_cap):
    # Constants are single-buffered (counted once); streamed inputs are
    # double-buffered; plus the dominant in-kernel temporaries.
    const_bytes = 2 * NGp * D * 2 + D * 4
    per_row = (2 * (K * 4 + 2 * D * 4)        # idx + plin + drug streams (x2 buffers)
               + K * NGp * 6                  # one-hot (bf16 + f32 weighted copy)
               + 2 * K * D * 4                # matmul acc + tanh activations
               + NGp * 4 + 2 * D * 4 + 64)    # w_oh, context, misc
    budget = int(0.45 * vmem_cap)             # headroom for compiler temps/spill
    tb = (budget - const_bytes) // max(per_row, 1)
    tb = max(8, min(512, (tb // 8) * 8))
    # Keep >= 4 grid steps when the batch allows it so the "parallel" axis
    # splits across TensorCores (v7x) and the input pipeline has overlap.
    tb = min(tb, max(8, _round_up(pl.cdiv(max(B, 1), 4), 8)))
    return tb


def cadre_forward(gene_indices, pathway_indices, params, *, tb=None):
    gene_table = params["gene_emb"].astype(jnp.float32)            # (NG, D)
    NG, D = gene_table.shape
    B, K = gene_indices.shape

    # PyTorch Linear: y = x @ W.T + b
    wt_t = params["attn_tanh_w"].T.astype(jnp.float32)             # (D, D)
    bt = params["attn_tanh_b"].astype(jnp.float32)                 # (D,)
    wq = params["attn_query_w"].astype(jnp.float32)                # (1, D)
    # attn_query bias cancels in the softmax -> not passed to the kernel.

    # ---- hoisted per-gene transform (done once, not per (b, k) occurrence).
    gt = gene_table @ wt_t + bt[None, :]                           # (NG, D)

    # Per-sample streams (tiny (B, D) gathers stay in plain XLA).
    path_emb = jnp.take(params["pathway_emb"].astype(jnp.float32),
                        pathway_indices, axis=0)                   # (B, D)
    plin = path_emb @ wt_t                                         # (B, D), bias lives in gt
    # NOTE: matches the PyTorch module: drug_emb is indexed by pathway_indices.
    drug = jnp.take(params["drug_emb"].astype(jnp.float32),
                    pathway_indices, axis=0)                       # (B, D)

    # bf16 MXU operands; pad the gene axis to a sublane multiple.
    NGp = _round_up(NG, 8)
    gt_bf = jnp.zeros((NGp, D), jnp.bfloat16).at[:NG].set(gt.astype(jnp.bfloat16))
    tab_bf = jnp.zeros((NGp, D), jnp.bfloat16).at[:NG].set(gene_table.astype(jnp.bfloat16))

    vmem_cap = _vmem_capacity_bytes()
    if tb is None:
        tb = _pick_tb(B, K, D, NGp, vmem_cap)
    tb = max(8, _round_up(int(tb), 8))
    nb = pl.cdiv(B, tb)
    Bp = nb * tb
    if Bp != B:  # pad so every grid block is full (padded rows use gene 0)
        pad = Bp - B
        gene_indices = jnp.pad(gene_indices, ((0, pad), (0, 0)))
        plin = jnp.pad(plin, ((0, pad), (0, 0)))
        drug = jnp.pad(drug, ((0, pad), (0, 0)))

    idx = jnp.clip(gene_indices, 0, NG - 1).astype(jnp.int32).reshape(Bp * K, 1)

    # VMEM need: single-buffered constants + double-buffered streams + temps.
    need = (2 * NGp * D * 2 + D * 4
            + 2 * (tb * K * 4 + 2 * tb * D * 4 + tb * 4)
            + tb * K * NGp * 6 + 2 * tb * K * D * 4 + tb * (NGp + 2 * D) * 4)
    vmem_limit = int(min(max(need + (8 << 20), 32 << 20),
                         max(32 << 20, int(0.75 * vmem_cap))))

    def _const_spec(shape):
        index_map = lambda i: (0,) * len(shape)
        try:   # single-buffer the never-changing inputs (halves their VMEM)
            return pl.BlockSpec(shape, index_map, pipeline_mode=pl.Buffered(1))
        except TypeError:   # older jax without pipeline_mode kwarg
            return pl.BlockSpec(shape, index_map)

    grid_spec = pltpu.PrefetchScalarGridSpec(
        num_scalar_prefetch=0,
        grid=(nb,),
        in_specs=[
            pl.BlockSpec((tb * K, 1), lambda i: (i, 0)),   # gene indices
            _const_spec((NGp, D)),                         # gene_table @ Wt.T + b
            _const_spec((NGp, D)),                         # raw gene_table
            pl.BlockSpec((tb, D), lambda i: (i, 0)),       # pathway @ Wt.T
            pl.BlockSpec((tb, D), lambda i: (i, 0)),       # drug rows
            _const_spec((1, D)),                           # Wq
        ],
        out_specs=pl.BlockSpec((1, 1, tb), lambda i: (i, 0, 0)),
    )

    out = pl.pallas_call(
        cadre_kernel,
        grid_spec=grid_spec,
        out_shape=jax.ShapeDtypeStruct((nb, 1, tb), jnp.float32),
        compiler_params=pltpu.CompilerParams(
            dimension_semantics=("parallel",),             # megacore split over blocks
            vmem_limit_bytes=vmem_limit),
    )(idx, gt_bf, tab_bf, plin, drug, wq)

    return out.reshape(Bp)[:B]                             # (B,)


def cadre_reference(gene_indices, pathway_indices, params):
    gene_emb = jnp.take(params["gene_emb"], gene_indices, axis=0)
    path_emb = jnp.take(params["pathway_emb"], pathway_indices, axis=0)
    drug_emb = jnp.take(params["drug_emb"], pathway_indices, axis=0)
    h = jnp.tanh((gene_emb + path_emb[:, None, :]) @ params["attn_tanh_w"].T
                 + params["attn_tanh_b"])
    scores = (h @ params["attn_query_w"].T)[..., 0] + params["attn_query_b"][0]
    w = jax.nn.softmax(scores, axis=-1)
    context = jnp.sum(w[..., None] * gene_emb, axis=1)
    dot = jnp.sum(context * drug_emb, axis=-1)
    return jax.nn.sigmoid(dot)


if __name__ == "__main__":
    B, K, D = 32, 16, 256           # emb_dim 200 -> 256 for lane alignment
    num_genes, num_pathways = 64, 16

    key = jax.random.PRNGKey(0)
    kg, kp, kd, kw1, kb1, kw2, kb2, ki1, ki2 = jax.random.split(key, 9)

    params = {
        "gene_emb": jax.random.normal(kg, (num_genes, D), jnp.float32),
        "pathway_emb": jax.random.normal(kp, (num_pathways, D), jnp.float32),
        "drug_emb": jax.random.normal(kd, (num_pathways, D), jnp.float32),
        "attn_tanh_w": jax.random.normal(kw1, (D, D), jnp.float32) * 0.05,
        "attn_tanh_b": jax.random.normal(kb1, (D,), jnp.float32) * 0.05,
        "attn_query_w": jax.random.normal(kw2, (1, D), jnp.float32) * 0.05,
        "attn_query_b": jax.random.normal(kb2, (1,), jnp.float32) * 0.05,
    }

    gene_indices = jax.random.randint(ki1, (B, K), 0, num_genes, jnp.int32)
    pathway_indices = jax.random.randint(ki2, (B,), 0, num_pathways, jnp.int32)

    # tb=8 -> grid=(4,) so the batch pipeline / megacore split is exercised.
    pred = jax.block_until_ready(
        cadre_forward(gene_indices, pathway_indices, params, tb=8))
    ref = jax.block_until_ready(
        cadre_reference(gene_indices, pathway_indices, params))

    assert pred.shape == (B,)
    # bf16 MXU operands (gene tables / one-hot) vs. an f32 reference: expected
    # drift at the sigmoid output is a few 1e-3; a real math bug would be O(0.1).
    assert jnp.allclose(pred, ref, atol=2e-2, rtol=2e-2), (
        float(jnp.max(jnp.abs(pred - ref))))
    print("KERNEL_OK")
</pallas_src>

<mosaic_0001>
module attributes {stable_mosaic.version = 11 : i64} {
  func.func @cadre_kernel(%arg0: i32, %arg1: memref<128x1xi32, #tpu.memory_space<vmem>>, %arg2: memref<64x256xbf16, #tpu.memory_space<vmem>>, %arg3: memref<64x256xbf16, #tpu.memory_space<vmem>>, %arg4: memref<8x256xf32, #tpu.memory_space<vmem>>, %arg5: memref<8x256xf32, #tpu.memory_space<vmem>>, %arg6: memref<1x256xf32, #tpu.memory_space<vmem>>, %arg7: memref<1x1x8xf32, #tpu.memory_space<vmem>>) attributes {dimension_semantics = [#tpu.dimension_semantics<parallel>], iteration_bounds = array<i64: 4>, scalar_prefetch = 0 : i64, scratch_operands = 0 : i64, tpu.core_type = #tpu.core_type<tc>, window_params = [{transform_indices = @transform_0, window_bounds = array<i64: 128, 1>}, {pipeline_mode = #tpu.pipeline_mode<synchronous>, transform_indices = @transform_1, window_bounds = array<i64: 64, 256>}, {pipeline_mode = #tpu.pipeline_mode<synchronous>, transform_indices = @transform_2, window_bounds = array<i64: 64, 256>}, {transform_indices = @transform_3, window_bounds = array<i64: 8, 256>}, {transform_indices = @transform_4, window_bounds = array<i64: 8, 256>}, {pipeline_mode = #tpu.pipeline_mode<synchronous>, transform_indices = @transform_5, window_bounds = array<i64: 1, 256>}, {transform_indices = @transform_6, window_bounds = array<i64: 1, 1, 8>}]} {
    %c0 = arith.constant 0 : index
    %c0_0 = arith.constant 0 : index
    %0 = vector.load %arg1[%c0, %c0_0] : memref<128x1xi32, #tpu.memory_space<vmem>>, vector<128x1xi32>
    %1 = tpu.iota {dimensions = array<i32: 1>} : vector<128x64xi32>
    %2 = vector.broadcast %0 : vector<128x1xi32> to vector<128x64xi32>
    %3 = arith.cmpi eq, %2, %1 : vector<128x64xi32>
    %4 = arith.extui %3 : vector<128x64xi1> to vector<128x64xi32>
    %5 = arith.sitofp %4 : vector<128x64xi32> to vector<128x64xf32>
    %6 = arith.truncf %5 : vector<128x64xf32> to vector<128x64xbf16>
    %c0_1 = arith.constant 0 : index
    %c0_2 = arith.constant 0 : index
    %7 = vector.load %arg2[%c0_1, %c0_2] : memref<64x256xbf16, #tpu.memory_space<vmem>>, vector<64x256xbf16>
    %cst = arith.constant dense<0.000000e+00> : vector<128x256xf32>
    %8 = tpu.matmul %6, %7, %cst {dimension_numbers = #tpu.dot_dimension_numbers<[1], [0], [0], [1], [0, 0, 1, 1], [], []>} : vector<128x64xbf16>, vector<64x256xbf16>, vector<128x256xf32> -> vector<128x256xf32>
    %9 = vector.shape_cast %8 : vector<128x256xf32> to vector<8x16x256xf32>
    %c0_3 = arith.constant 0 : index
    %c0_4 = arith.constant 0 : index
    %10 = vector.load %arg4[%c0_3, %c0_4] : memref<8x256xf32, #tpu.memory_space<vmem>>, vector<8x256xf32>
    %11 = vector.shape_cast %10 : vector<8x256xf32> to vector<8x1x256xf32>
    %12 = vector.broadcast %11 : vector<8x1x256xf32> to vector<8x16x256xf32>
    %13 = arith.addf %9, %12 : vector<8x16x256xf32>
    %14 = math.tanh %13 : vector<8x16x256xf32>
    %c0_5 = arith.constant 0 : index
    %c0_6 = arith.constant 0 : index
    %15 = vector.load %arg6[%c0_5, %c0_6] : memref<1x256xf32, #tpu.memory_space<vmem>>, vector<1x256xf32>
    %16 = vector.shape_cast %15 : vector<1x256xf32> to vector<1x1x256xf32>
    %17 = vector.broadcast %16 : vector<1x1x256xf32> to vector<8x16x256xf32>
    %18 = arith.mulf %14, %17 : vector<8x16x256xf32>
    %cst_7 = arith.constant dense<0.000000e+00> : vector<8x16xf32>
    %19 = vector.multi_reduction <add>, %18, %cst_7 [2] : vector<8x16x256xf32> to vector<8x16xf32>
    %cst_8 = arith.constant dense<0xFF800000> : vector<8xf32>
    %20 = vector.multi_reduction <maximumf>, %19, %cst_8 [1] : vector<8x16xf32> to vector<8xf32>
    %21 = vector.shape_cast %20 : vector<8xf32> to vector<8x1xf32>
    %22 = vector.broadcast %21 : vector<8x1xf32> to vector<8x16xf32>
    %23 = arith.subf %19, %22 : vector<8x16xf32>
    %24 = math.exp %23 : vector<8x16xf32>
    %cst_9 = arith.constant dense<0.000000e+00> : vector<8xf32>
    %25 = vector.multi_reduction <add>, %24, %cst_9 [1] : vector<8x16xf32> to vector<8xf32>
    %26 = vector.shape_cast %25 : vector<8xf32> to vector<8x1xf32>
    %27 = tpu.reciprocal %26 {approx = true} : vector<8x1xf32> -> vector<8x1xf32>
    %28 = vector.broadcast %27 : vector<8x1xf32> to vector<8x16xf32>
    %29 = arith.mulf %24, %28 : vector<8x16xf32>
    %30 = vector.shape_cast %29 : vector<8x16xf32> to vector<8x16x1xf32>
    %31 = vector.shape_cast %6 : vector<128x64xbf16> to vector<8x16x64xbf16>
    %32 = arith.extf %31 : vector<8x16x64xbf16> to vector<8x16x64xf32>
    %33 = vector.broadcast %30 : vector<8x16x1xf32> to vector<8x16x64xf32>
    %34 = arith.mulf %33, %32 : vector<8x16x64xf32>
    %cst_10 = arith.constant dense<0.000000e+00> : vector<8x64xf32>
    %35 = vector.multi_reduction <add>, %34, %cst_10 [1] : vector<8x16x64xf32> to vector<8x64xf32>
    %36 = arith.truncf %35 : vector<8x64xf32> to vector<8x64xbf16>
    %c0_11 = arith.constant 0 : index
    %c0_12 = arith.constant 0 : index
    %37 = vector.load %arg3[%c0_11, %c0_12] : memref<64x256xbf16, #tpu.memory_space<vmem>>, vector<64x256xbf16>
    %cst_13 = arith.constant dense<0.000000e+00> : vector<8x256xf32>
    %38 = tpu.matmul %36, %37, %cst_13 {dimension_numbers = #tpu.dot_dimension_numbers<[1], [0], [0], [1], [0, 0, 1, 1], [], []>} : vector<8x64xbf16>, vector<64x256xbf16>, vector<8x256xf32> -> vector<8x256xf32>
    %c0_14 = arith.constant 0 : index
    %c0_15 = arith.constant 0 : index
    %39 = vector.load %arg5[%c0_14, %c0_15] : memref<8x256xf32, #tpu.memory_space<vmem>>, vector<8x256xf32>
    %40 = arith.mulf %38, %39 : vector<8x256xf32>
    %cst_16 = arith.constant dense<0.000000e+00> : vector<8xf32>
    %41 = vector.multi_reduction <add>, %40, %cst_16 [1] : vector<8x256xf32> to vector<8xf32>
    %42 = vector.shape_cast %41 : vector<8xf32> to vector<8x1xf32>
    %43 = arith.negf %42 : vector<8x1xf32>
    %44 = math.exp %43 : vector<8x1xf32>
    %cst_17 = arith.constant 1.000000e+00 : f32
    %45 = vector.broadcast %cst_17 : f32 to vector<8x1xf32>
    %46 = arith.addf %45, %44 : vector<8x1xf32>
    %47 = arith.divf %45, %46 : vector<8x1xf32>
    %48 = tpu.iota {dimensions = array<i32: 0>} : vector<8x8xi32>
    %49 = tpu.iota {dimensions = array<i32: 1>} : vector<8x8xi32>
    %50 = arith.cmpi eq, %48, %49 : vector<8x8xi32>
    %cst_18 = arith.constant 0.000000e+00 : f32
    %51 = vector.shape_cast %47 : vector<8x1xf32> to vector<8x1xf32>
    %52 = vector.broadcast %51 : vector<8x1xf32> to vector<8x8xf32>
    %53 = vector.broadcast %cst_18 : f32 to vector<8x8xf32>
    %54 = arith.select %50, %52, %53 : vector<8x8xi1>, vector<8x8xf32>
    %cst_19 = arith.constant dense<0.000000e+00> : vector<8xf32>
    %55 = vector.multi_reduction <add>, %54, %cst_19 [0] : vector<8x8xf32> to vector<8xf32>
    %56 = vector.shape_cast %55 : vector<8xf32> to vector<1x8xf32>
    %57 = vector.shape_cast %56 : vector<1x8xf32> to vector<1x1x8xf32>
    %c0_20 = arith.constant 0 : index
    %c0_21 = arith.constant 0 : index
    %c0_22 = arith.constant 0 : index
    %58 = vector.load %arg7[%c0_20, %c0_21, %c0_22] : memref<1x1x8xf32, #tpu.memory_space<vmem>>, vector<1x1x8xf32>
    tpu.vector_store %arg7[%c0_20, %c0_21, %c0_22], %57 {strides = array<i32>} : memref<1x1x8xf32, #tpu.memory_space<vmem>>, vector<1x1x8xf32>,
    return
  }
  func.func @transform_0(%arg0: i32) -> (i32, i32) {
    %c0_i32 = arith.constant 0 : i32
    %c0_i32_0 = arith.constant 0 : i32
    return %arg0, %c0_i32 : i32, i32
  }
  func.func @transform_1(%arg0: i32) -> (i32, i32) {
    %c0_i32 = arith.constant 0 : i32
    %c0_i32_0 = arith.constant 0 : i32
    %c0_i32_1 = arith.constant 0 : i32
    return %c0_i32, %c0_i32_0 : i32, i32
  }
  func.func @transform_2(%arg0: i32) -> (i32, i32) {
    %c0_i32 = arith.constant 0 : i32
    %c0_i32_0 = arith.constant 0 : i32
    %c0_i32_1 = arith.constant 0 : i32
    return %c0_i32, %c0_i32_0 : i32, i32
  }
  func.func @transform_3(%arg0: i32) -> (i32, i32) {
    %c0_i32 = arith.constant 0 : i32
    %c0_i32_0 = arith.constant 0 : i32
    return %arg0, %c0_i32 : i32, i32
  }
  func.func @transform_4(%arg0: i32) -> (i32, i32) {
    %c0_i32 = arith.constant 0 : i32
    %c0_i32_0 = arith.constant 0 : i32
    return %arg0, %c0_i32 : i32, i32
  }
  func.func @transform_5(%arg0: i32) -> (i32, i32) {
    %c0_i32 = arith.constant 0 : i32
    %c0_i32_0 = arith.constant 0 : i32
    %c0_i32_1 = arith.constant 0 : i32
    return %c0_i32, %c0_i32_0 : i32, i32
  }
  func.func @transform_6(%arg0: i32) -> (i32, i32, i32) {
    %c0_i32 = arith.constant 0 : i32
    %c0_i32_0 = arith.constant 0 : i32
    %c0_i32_1 = arith.constant 0 : i32
    return %arg0, %c0_i32, %c0_i32_0 : i32, i32, i32
  }
}

</mosaic_0001>

<llo_original>
// kernel: tpu_custom_call.1
$region0: #{tpu_custom_call.1}
  #allocation0 [shape = 'u32[]', space=smem, size = 0x4, offset = 0x4, fixed_abs, tag = 'smem constant byte address 0x4 - core index']
  #allocation1 [shape = 'u32[144,128]{1,0:T(1,128)}', space=vmem, size = 0x12000, scoped, tag = 'internal scratch']
  %s0 = inlined_call_operand.vmem [shape: s32[512,1], index: 0, kind: input, shape index: {}]
  %s1 = inlined_call_operand.vmem [shape: bf16[64,256], index: 1, kind: input, shape index: {}]
  %s2 = inlined_call_operand.vmem [shape: bf16[64,256], index: 2, kind: input, shape index: {}]
  %s3 = inlined_call_operand.vmem [shape: f32[32,256], index: 3, kind: input, shape index: {}]
  %s4 = inlined_call_operand.vmem [shape: f32[32,256], index: 4, kind: input, shape index: {}]
  %s5 = inlined_call_operand.vmem [shape: f32[1,256], index: 5, kind: input, shape index: {}]
  %s6 = inlined_call_operand.hbm [shape: f32[4,1,8], index: 6, kind: output, shape index: {}]
  %s7 = sld [smem:[#allocation0]]
  $region57: #{tpu_custom_call.1} parent=0
    _
  %s9 = ssub.s32 1, %s7
  %s10 = scalar_select 0, %s9, %s7
  $region1: #{tpu_custom_call.1} parent=0
    #allocation2 [shape = 'u8[1024]{0}', space=vmem, size = 0x400, scoped, tag = 'output window, operand 0']
    #allocation3 [shape = 's32[2]{0}', space=sflag, size = 0x8, scoped, tag = 'scoped memory for tpu_custom_call.1']
    %11 = vsyncpa [#allocation3], 0
    %s12 = scalar_lea.sflag [#allocation3], 1
    %13 = vsyncpa %s12, 0
    loop: start=0, step=1, limit=6
    $region2: #{tpu_custom_call.1} parent=1 // loop_pre_header
      _
    $region3: #{tpu_custom_call.1} parent=1 // loop_header
      %s15 = sphi 0, %s19
      %p16 = scmp.ge.s32.totalorder %s15, 6
      %s25 = sphi 0, %s27
      %s28 = sphi 0, %s25
      %s29 = sphi 0, %s28
      %s45 = sphi 0, %s29
      %s49 = sphi 0, %s49
      %s51 = sphi 0, %s49
      %s52 = sphi 0, %s51
      %s66 = sphi 0, %s52
      %s70 = sphi 0, %s70
      %s72 = sphi 0, %s70
      %s73 = sphi 0, %s72
      %s87 = sphi 0, %s73
      %s93 = sphi 0, %s95
      %s96 = sphi 0, %s93
      %s97 = sphi 0, %s96
      %s113 = sphi 0, %s97
      %s119 = sphi 0, %s121
      %s122 = sphi 0, %s119
      %s123 = sphi 0, %s122
      %s139 = sphi 0, %s123
      %s143 = sphi 0, %s143
      %s145 = sphi 0, %s143
      %s146 = sphi 0, %s145
      %s160 = sphi 0, %s146
      %s166 = sphi 0, %s168
      %s169 = sphi 0, %s166
      %s170 = sphi 0, %s169
      %s186 = sphi 0, %s170
    $region4: #{tpu_custom_call.1} parent=1 // loop_header_branch
      %18 = sbr.rel (%p16) target = $region8
    $region5: #{tpu_custom_call.1} parent=1 // loop_body
      %s20 = ssub.s32 %s15, 1
      %s21 = ssub.s32 %s15, 2
      %s22 = sadd.s32 %s15, 1
      %s23 = ssub.s32 %s15, %s22
      %p24 = scmp.eq.s32.totalorder %s23, 0
      %s26 = sadd.s32 %s25, 1
      %s27 = scalar_select %p24, %s25, %s26
      %p30 = pneg %p24
      %p31 = scmp.eq.s32.totalorder %s15, 3
      %p32 = por %p30, %p31
      %p33 = scmp.ne.s32.totalorder %s25, %s28
      %p34 = scmp.eq.s32.totalorder %s15, 0
      %p35 = por %p33, %p34
      %p36 = scmp.ne.s32.totalorder %s25, %s28
      %p37 = scmp.eq.s32.totalorder %s20, 3
      %p38 = por %p36, %p37
      %p39 = scmp.ne.s32.totalorder %s28, %s29
      %p40 = scmp.eq.s32.totalorder %s20, 0
      %p41 = por %p39, %p40
      %p42 = scmp.ne.s32.totalorder %s28, %s29
      %p43 = scmp.eq.s32.totalorder %s21, 3
      %p44 = por %p42, %p43
      %p46 = scmp.ne.s32.totalorder %s29, %s45
      %p47 = scmp.eq.s32.totalorder %s21, 0
      %p48 = por %p46, %p47
      %s50 = sadd.s32 %s49, 1
      %p53 = scmp.eq.s32.totalorder %s15, 3
      %p54 = scmp.ne.s32.totalorder %s49, %s51
      %p55 = scmp.eq.s32.totalorder %s15, 0
      %p56 = por %p54, %p55
      %p57 = scmp.ne.s32.totalorder %s49, %s51
      %p58 = scmp.eq.s32.totalorder %s20, 3
      %p59 = por %p57, %p58
      %p60 = scmp.ne.s32.totalorder %s51, %s52
      %p61 = scmp.eq.s32.totalorder %s20, 0
      %p62 = por %p60, %p61
      %p63 = scmp.ne.s32.totalorder %s51, %s52
      %p64 = scmp.eq.s32.totalorder %s21, 3
      %p65 = por %p63, %p64
      %p67 = scmp.ne.s32.totalorder %s52, %s66
      %p68 = scmp.eq.s32.totalorder %s21, 0
      %p69 = por %p67, %p68
      %s71 = sadd.s32 %s70, 1
      %p74 = scmp.eq.s32.totalorder %s15, 3
      %p75 = scmp.ne.s32.totalorder %s70, %s72
      %p76 = scmp.eq.s32.totalorder %s15, 0
      %p77 = por %p75, %p76
      %p78 = scmp.ne.s32.totalorder %s70, %s72
      %p79 = scmp.eq.s32.totalorder %s20, 3
      %p80 = por %p78, %p79
      %p81 = scmp.ne.s32.totalorder %s72, %s73
      %p82 = scmp.eq.s32.totalorder %s20, 0
      %p83 = por %p81, %p82
      %p84 = scmp.ne.s32.totalorder %s72, %s73
      %p85 = scmp.eq.s32.totalorder %s21, 3
      %p86 = por %p84, %p85
      %p88 = scmp.ne.s32.totalorder %s73, %s87
      %p89 = scmp.eq.s32.totalorder %s21, 0
      %p90 = por %p88, %p89
      %s91 = ssub.s32 %s15, %s22
      %p92 = scmp.eq.s32.totalorder %s91, 0
      %s94 = sadd.s32 %s93, 1
      %s95 = scalar_select %p92, %s93, %s94
      %p98 = pneg %p92
      %p99 = scmp.eq.s32.totalorder %s15, 3
      %p100 = por %p98, %p99
      %p101 = scmp.ne.s32.totalorder %s93, %s96
      %p102 = scmp.eq.s32.totalorder %s15, 0
      %p103 = por %p101, %p102
      %p104 = scmp.ne.s32.totalorder %s93, %s96
      %p105 = scmp.eq.s32.totalorder %s20, 3
      %p106 = por %p104, %p105
      %p107 = scmp.ne.s32.totalorder %s96, %s97
      %p108 = scmp.eq.s32.totalorder %s20, 0
      %p109 = por %p107, %p108
      %p110 = scmp.ne.s32.totalorder %s96, %s97
      %p111 = scmp.eq.s32.totalorder %s21, 3
      %p112 = por %p110, %p111
      %p114 = scmp.ne.s32.totalorder %s97, %s113
      %p115 = scmp.eq.s32.totalorder %s21, 0
      %p116 = por %p114, %p115
      %s117 = ssub.s32 %s15, %s22
      %p118 = scmp.eq.s32.totalorder %s117, 0
      %s120 = sadd.s32 %s119, 1
      %s121 = scalar_select %p118, %s119, %s120
      %p124 = pneg %p118
      %p125 = scmp.eq.s32.totalorder %s15, 3
      %p126 = por %p124, %p125
      %p127 = scmp.ne.s32.totalorder %s119, %s122
      %p128 = scmp.eq.s32.totalorder %s15, 0
      %p129 = por %p127, %p128
      %p130 = scmp.ne.s32.totalorder %s119, %s122
      %p131 = scmp.eq.s32.totalorder %s20, 3
      %p132 = por %p130, %p131
      %p133 = scmp.ne.s32.totalorder %s122, %s123
      %p134 = scmp.eq.s32.totalorder %s20, 0
      %p135 = por %p133, %p134
      %p136 = scmp.ne.s32.totalorder %s122, %s123
      %p137 = scmp.eq.s32.totalorder %s21, 3
      %p138 = por %p136, %p137
      %p140 = scmp.ne.s32.totalorder %s123, %s139
      %p141 = scmp.eq.s32.totalorder %s21, 0
      %p142 = por %p140, %p141
      %s144 = sadd.s32 %s143, 1
      %p147 = scmp.eq.s32.totalorder %s15, 3
      %p148 = scmp.ne.s32.totalorder %s143, %s145
      %p149 = scmp.eq.s32.totalorder %s15, 0
      %p150 = por %p148, %p149
      %p151 = scmp.ne.s32.totalorder %s143, %s145
      %p152 = scmp.eq.s32.totalorder %s20, 3
      %p153 = por %p151, %p152
      %p154 = scmp.ne.s32.totalorder %s145, %s146
      %p155 = scmp.eq.s32.totalorder %s20, 0
      %p156 = por %p154, %p155
      %p157 = scmp.ne.s32.totalorder %s145, %s146
      %p158 = scmp.eq.s32.totalorder %s21, 3
      %p159 = por %p157, %p158
      %p161 = scmp.ne.s32.totalorder %s146, %s160
      %p162 = scmp.eq.s32.totalorder %s21, 0
      %p163 = por %p161, %p162
      %s164 = ssub.s32 %s15, %s22
      %p165 = scmp.eq.s32.totalorder %s164, 0
      %s167 = sadd.s32 %s166, 1
      %s168 = scalar_select %p165, %s166, %s167
      %p171 = pneg %p165
      %p172 = scmp.eq.s32.totalorder %s15, 3
      %p173 = por %p171, %p172
      %p174 = scmp.ne.s32.totalorder %s166, %s169
      %p175 = scmp.eq.s32.totalorder %s15, 0
      %p176 = por %p174, %p175
      %p177 = scmp.ne.s32.totalorder %s166, %s169
      %p178 = scmp.eq.s32.totalorder %s20, 3
      %p179 = por %p177, %p178
      %p180 = scmp.ne.s32.totalorder %s169, %s170
      %p181 = scmp.eq.s32.totalorder %s20, 0
      %p182 = por %p180, %p181
      %p183 = scmp.ne.s32.totalorder %s169, %s170
      %p184 = scmp.eq.s32.totalorder %s21, 3
      %p185 = por %p183, %p184
      %p187 = scmp.ne.s32.totalorder %s170, %s186
      %p188 = scmp.eq.s32.totalorder %s21, 0
      %p189 = por %p187, %p188
      %p190 = scmp.le.s32.totalorder 1, %s15
      %p191 = scmp.lt.s32.totalorder %s15, 5
      %p192 = pnand %p190, %p191
      %p193 = pneg %p192
      // Predicated region
      $region9: #{tpu_custom_call.1} parent=5 // pred_check
        _
      $region10: #{tpu_custom_call.1} parent=5 // pred_check_branch
        %195 = sbr.rel (%p192) target = $region12
      $region11: #{tpu_custom_call.1} parent=5 // pred_region
        %s196 = ssub.s32 %s15, 1
        // Predicated region
        $region13: #{tpu_custom_call.1} parent=11 // pred_check
          %p197 = pneg %p62
        $region14: #{tpu_custom_call.1} parent=11 // pred_check_branch
          %199 = sbr.rel (%p197) target = $region16
        $region15: #{tpu_custom_call.1} parent=11 // pred_region
          _
        $region16: #{tpu_custom_call.1} parent=11 // pred_fallthru
          _
        // Predicated region
        $region17: #{tpu_custom_call.1} parent=11 // pred_check
          %p200 = pneg %p83
        $region18: #{tpu_custom_call.1} parent=11 // pred_check_branch
          %202 = sbr.rel (%p200) target = $region20
        $region19: #{tpu_custom_call.1} parent=11 // pred_region
          _
        $region20: #{tpu_custom_call.1} parent=11 // pred_fallthru
          _
        // Predicated region
        $region21: #{tpu_custom_call.1} parent=11 // pred_check
          %p203 = pneg %p156
        $region22: #{tpu_custom_call.1} parent=11 // pred_check_branch
          %205 = sbr.rel (%p203) target = $region24
        $region23: #{tpu_custom_call.1} parent=11 // pred_region
          _
        $region24: #{tpu_custom_call.1} parent=11 // pred_fallthru
          _
      $region12: #{tpu_custom_call.1} parent=5 // pred_fallthru
        _
      %p206 = scmp.lt.s32.totalorder %s15, 4
      // Predicated region
      $region25: #{tpu_custom_call.1} parent=5 // pred_check
        %p207 = pneg %p206
      $region26: #{tpu_custom_call.1} parent=5 // pred_check_branch
        %209 = sbr.rel (%p207) target = $region28
      $region27: #{tpu_custom_call.1} parent=5 // pred_region
        // Predicated region
        $region29: #{tpu_custom_call.1} parent=27 // pred_check
          %p210 = pneg %p35
        $region30: #{tpu_custom_call.1} parent=27 // pred_check_branch
          %212 = sbr.rel (%p210) target = $region32
        $region31: #{tpu_custom_call.1} parent=27 // pred_region
          %s213 = smul.u32 16, %s15
          %p214 = scmp.lt.s32.totalorder %s213, 63
          %s215 = scalar_select %p214, %s213, 63
          %s216 = smul.addr %s215, 8
          %s217 = scalar_lea.vmem %s0, %s216
          %s218 = smul.u32 16, %s15
        $region32: #{tpu_custom_call.1} parent=27 // pred_fallthru
          _
        // Predicated region
        $region33: #{tpu_custom_call.1} parent=27 // pred_check
          %p219 = pneg %p103
        $region34: #{tpu_custom_call.1} parent=27 // pred_check_branch
          %221 = sbr.rel (%p219) target = $region36
        $region35: #{tpu_custom_call.1} parent=27 // pred_region
          %p222 = scmp.lt.s32.totalorder %s15, 3
          %s223 = scalar_select %p222, %s15, 3
          %s224 = smul.addr %s223, 2
          %s225 = smul.addr %s224, 8
          %s226 = scalar_lea.vmem %s3, %s225
        $region36: #{tpu_custom_call.1} parent=27 // pred_fallthru
          _
        // Predicated region
        $region37: #{tpu_custom_call.1} parent=27 // pred_check
          %p227 = pneg %p129
        $region38: #{tpu_custom_call.1} parent=27 // pred_check_branch
          %229 = sbr.rel (%p227) target = $region40
        $region39: #{tpu_custom_call.1} parent=27 // pred_region
          %p230 = scmp.lt.s32.totalorder %s15, 3
          %s231 = scalar_select %p230, %s15, 3
          %s232 = smul.addr %s231, 2
          %s233 = smul.addr %s232, 8
          %s234 = scalar_lea.vmem %s4, %s233
        $region40: #{tpu_custom_call.1} parent=27 // pred_fallthru
          _
      $region28: #{tpu_custom_call.1} parent=5 // pred_fallthru
        _
      %p235 = scmp.le.s32.totalorder 1, %s15
      %p236 = scmp.lt.s32.totalorder %s15, 5
      %p237 = pnand %p235, %p236
      %p238 = pneg %p237
      // Predicated region
      $region41: #{tpu_custom_call.1} parent=5 // pred_check
        _
      $region42: #{tpu_custom_call.1} parent=5 // pred_check_branch
        %240 = sbr.rel (%p237) target = $region44
      $region43: #{tpu_custom_call.1} parent=5 // pred_region
        %s241 = ssub.s32 %s15, 1
        %s242 = smul.u32 16, %s20
        %p243 = scmp.lt.s32.totalorder %s242, 63
        %s244 = scalar_select %p243, %s242, 63
        %s245 = smul.addr %s244, 8
        %s246 = scalar_lea.vmem %s0, %s245
        %p247 = pneg %p41
        %p248 = pneg %p38
        %p249 = pneg %p62
        %p250 = pneg %p59
        %p251 = pneg %p83
        %p252 = pneg %p80
        %p253 = scmp.lt.s32.totalorder %s20, 3
        %s254 = scalar_select %p253, %s20, 3
        %s255 = smul.addr %s254, 2
        %s256 = smul.addr %s255, 8
        %s257 = scalar_lea.vmem %s3, %s256
        %p258 = pneg %p109
        %p259 = pneg %p106
        %p260 = scmp.lt.s32.totalorder %s20, 3
        %s261 = scalar_select %p260, %s20, 3
        %s262 = smul.addr %s261, 2
        %s263 = smul.addr %s262, 8
        %s264 = scalar_lea.vmem %s4, %s263
        %p265 = pneg %p135
        %p266 = pneg %p132
        %p267 = pneg %p156
        %p268 = pneg %p153
        %p269 = pneg %p182
        %p270 = pneg %p179
        %s271 = sand.u32 %s169, 1
        %s272 = scalar_lea.sflag [#allocation3], %s271
        %s273 = sand.u32 %s169, 1
        %s274 = scalar_lea.vmem [#allocation2], %s273
        %s275 = smul.u32 16, %s20
        %p276 = scmp.lt.s32.totalorder %s275, 63
        %s277 = scalar_select %p276, %s275, 63
        %s278 = smul.addr %s277, 8
        %s279 = scalar_lea.vmem %s0, %s278
        %s280 = smul.u32 16, %s20
        %p281 = scmp.lt.s32.totalorder %s20, 3
        %s282 = scalar_select %p281, %s20, 3
        %s283 = smul.addr %s282, 2
        %s284 = smul.addr %s283, 8
        %s285 = scalar_lea.vmem %s3, %s284
        %p286 = scmp.lt.s32.totalorder %s20, 3
        %s287 = scalar_select %p286, %s20, 3
        %s288 = smul.addr %s287, 2
        %s289 = smul.addr %s288, 8
        %s290 = scalar_lea.vmem %s4, %s289
        %v292 = vld [vmem:[%s279] sm:$0xff]
        %v293 = vld [vmem:[%s279 + $0x8] sm:$0xff]
        %v294 = vld [vmem:[%s279 + $0x10] sm:$0xff]
        %v295 = vld [vmem:[%s279 + $0x18] sm:$0xff]
        %v296 = vld [vmem:[%s279 + $0x20] sm:$0xff]
        %v297 = vld [vmem:[%s279 + $0x28] sm:$0xff]
        %v298 = vld [vmem:[%s279 + $0x30] sm:$0xff]
        %v299 = vld [vmem:[%s279 + $0x38] sm:$0xff]
        %v300 = vld [vmem:[%s279 + $0x40] sm:$0xff]
        %v301 = vld [vmem:[%s279 + $0x48] sm:$0xff]
        %v302 = vld [vmem:[%s279 + $0x50] sm:$0xff]
        %v303 = vld [vmem:[%s279 + $0x58] sm:$0xff]
        %v304 = vld [vmem:[%s279 + $0x60] sm:$0xff]
        %v305 = vld [vmem:[%s279 + $0x68] sm:$0xff]
        %v306 = vld [vmem:[%s279 + $0x70] sm:$0xff]
        %v307 = vld [vmem:[%s279 + $0x78] sm:$0xff]
        %v308 = vlaneseq
        %v309 = vand.u32 %v308, 127
        %310 = vset.pattern.permute.xlu0 0
        %311 = vperm.xlu0 %310, %v292
        %v312 = vpop.permute.xlu0 %311
        %313 = vset.pattern.permute.xlu0 0
        %314 = vperm.xlu0 %313, %v293
        %v315 = vpop.permute.xlu0 %314
        %316 = vset.pattern.permute.xlu0 0
        %317 = vperm.xlu0 %316, %v294
        %v318 = vpop.permute.xlu0 %317
        %319 = vset.pattern.permute.xlu0 0
        %320 = vperm.xlu0 %319, %v295
        %v321 = vpop.permute.xlu0 %320
        %322 = vset.pattern.permute.xlu0 0
        %323 = vperm.xlu0 %322, %v296
        %v324 = vpop.permute.xlu0 %323
        %325 = vset.pattern.permute.xlu0 0
        %326 = vperm.xlu0 %325, %v297
        %v327 = vpop.permute.xlu0 %326
        %328 = vset.pattern.permute.xlu0 0
        %329 = vperm.xlu0 %328, %v298
        %v330 = vpop.permute.xlu0 %329
        %331 = vset.pattern.permute.xlu0 0
        %332 = vperm.xlu0 %331, %v299
        %v333 = vpop.permute.xlu0 %332
        %334 = vset.pattern.permute.xlu0 0
        %335 = vperm.xlu0 %334, %v300
        %v336 = vpop.permute.xlu0 %335
        %337 = vset.pattern.permute.xlu0 0
        %338 = vperm.xlu0 %337, %v301
        %v339 = vpop.permute.xlu0 %338
        %340 = vset.pattern.permute.xlu0 0
        %341 = vperm.xlu0 %340, %v302
        %v342 = vpop.permute.xlu0 %341
        %343 = vset.pattern.permute.xlu0 0
        %344 = vperm.xlu0 %343, %v303
        %v345 = vpop.permute.xlu0 %344
        %346 = vset.pattern.permute.xlu0 0
        %347 = vperm.xlu0 %346, %v304
        %v348 = vpop.permute.xlu0 %347
        %349 = vset.pattern.permute.xlu0 0
        %350 = vperm.xlu0 %349, %v305
        %v351 = vpop.permute.xlu0 %350
        %352 = vset.pattern.permute.xlu0 0
        %353 = vperm.xlu0 %352, %v306
        %v354 = vpop.permute.xlu0 %353
        %355 = vset.pattern.permute.xlu0 0
        %356 = vperm.xlu0 %355, %v307
        %v357 = vpop.permute.xlu0 %356
        %vm358 = vcmp.eq.s32.totalorder %v312, %v309
        %vm359 = vcmp.eq.s32.totalorder %v315, %v309
        %vm360 = vcmp.eq.s32.totalorder %v318, %v309
        %vm361 = vcmp.eq.s32.totalorder %v321, %v309
        %vm362 = vcmp.eq.s32.totalorder %v324, %v309
        %vm363 = vcmp.eq.s32.totalorder %v327, %v309
        %vm364 = vcmp.eq.s32.totalorder %v330, %v309
        %vm365 = vcmp.eq.s32.totalorder %v333, %v309
        %vm366 = vcmp.eq.s32.totalorder %v336, %v309
        %vm367 = vcmp.eq.s32.totalorder %v339, %v309
        %vm368 = vcmp.eq.s32.totalorder %v342, %v309
        %vm369 = vcmp.eq.s32.totalorder %v345, %v309
        %vm370 = vcmp.eq.s32.totalorder %v348, %v309
        %vm371 = vcmp.eq.s32.totalorder %v351, %v309
        %vm372 = vcmp.eq.s32.totalorder %v354, %v309
        %vm373 = vcmp.eq.s32.totalorder %v357, %v309
        %v374 = vsel %vm358, 1, 0
        %v375 = vsel %vm359, 1, 0
        %v376 = vsel %vm360, 1, 0
        %v377 = vsel %vm361, 1, 0
        %v378 = vsel %vm362, 1, 0
        %v379 = vsel %vm363, 1, 0
        %v380 = vsel %vm364, 1, 0
        %v381 = vsel %vm365, 1, 0
        %v382 = vsel %vm366, 1, 0
        %v383 = vsel %vm367, 1, 0
        %v384 = vsel %vm368, 1, 0
        %v385 = vsel %vm369, 1, 0
        %v386 = vsel %vm370, 1, 0
        %v387 = vsel %vm371, 1, 0
        %v388 = vsel %vm372, 1, 0
        %v389 = vsel %vm373, 1, 0
        %v390 = vcvt.s32.f32 %v374
        %v391 = vcvt.s32.f32 %v375
        %v392 = vcvt.s32.f32 %v376
        %v393 = vcvt.s32.f32 %v377
        %v394 = vcvt.s32.f32 %v378
        %v395 = vcvt.s32.f32 %v379
        %v396 = vcvt.s32.f32 %v380
        %v397 = vcvt.s32.f32 %v381
        %v398 = vcvt.s32.f32 %v382
        %v399 = vcvt.s32.f32 %v383
        %v400 = vcvt.s32.f32 %v384
        %v401 = vcvt.s32.f32 %v385
        %v402 = vcvt.s32.f32 %v386
        %v403 = vcvt.s32.f32 %v387
        %v404 = vcvt.s32.f32 %v388
        %v405 = vcvt.s32.f32 %v389
        %v406 = vpack.c.bf16 %v391, %v390
        %v407 = vpack.c.bf16 %v393, %v392
        %v408 = vpack.c.bf16 %v395, %v394
        %v409 = vpack.c.bf16 %v397, %v396
        %v410 = vpack.c.bf16 %v399, %v398
        %v411 = vpack.c.bf16 %v401, %v400
        %v412 = vpack.c.bf16 %v403, %v402
        %v413 = vpack.c.bf16 %v405, %v404
        %v414 = vld [vmem:[%s1] sm:$0xff]
        %v415 = vld [vmem:[%s1 + $0x8] sm:$0xff]
        %v416 = vld [vmem:[%s1 + $0x10] sm:$0xff]
        %v417 = vld [vmem:[%s1 + $0x18] sm:$0xff]
        %v418 = vld [vmem:[%s1 + $0x20] sm:$0xff]
        %v419 = vld [vmem:[%s1 + $0x28] sm:$0xff]
        %v420 = vld [vmem:[%s1 + $0x30] sm:$0xff]
        %v421 = vld [vmem:[%s1 + $0x38] sm:$0xff]
        %v430 = vunpack.c.l.b16 %v414
        %v431 = vunpack.c.h.b16 %v414
        %v432 = vunpack.c.l.b16 %v415
        %v433 = vunpack.c.h.b16 %v415
        %v434 = vunpack.c.l.b16 %v416
        %v435 = vunpack.c.h.b16 %v416
        %v436 = vunpack.c.l.b16 %v417
        %v437 = vunpack.c.h.b16 %v417
        %v438 = vunpack.c.l.b16 %v418
        %v439 = vunpack.c.h.b16 %v418
        %v440 = vunpack.c.l.b16 %v419
        %v441 = vunpack.c.h.b16 %v419
        %v442 = vunpack.c.l.b16 %v420
        %v443 = vunpack.c.h.b16 %v420
        %v444 = vunpack.c.l.b16 %v421
        %v445 = vunpack.c.h.b16 %v421
        %v446 = vpack.c.b16 %v432, %v430
        %v447 = vpack.c.b16 %v433, %v431
        %v448 = vpack.c.b16 %v436, %v434
        %v449 = vpack.c.b16 %v437, %v435
        %v450 = vpack.c.b16 %v440, %v438
        %v451 = vpack.c.b16 %v441, %v439
        %v452 = vpack.c.b16 %v444, %v442
        %v453 = vpack.c.b16 %v445, %v443
        %vm462 = vcmask 523264
        %v464 = vsel %vm462, %v406, 0
        %v467 = vsel %vm462, %v407, 0
        %v470 = vsel %vm462, %v408, 0
        %v473 = vsel %vm462, %v409, 0
        %v476 = vsel %vm462, %v410, 0
        %v479 = vsel %vm462, %v411, 0
        %v482 = vsel %vm462, %v412, 0
        %v485 = vsel %vm462, %v413, 0
        %487 = vmatprep.subr.bf16.mxu0 %v447
        %488 = vmatpush1.bf16.msra.mxu0 %v446
        %489 = vmatprep.subr.bf16.mxu0 %v449
        %490 = vmatpush1.bf16.msra.mxu0 %v448
        %491 = vmatprep.subr.bf16.mxu0 %v451
        %492 = vmatpush1.bf16.msra.mxu0 %v450
        %493 = vmatprep.subr.bf16.mxu0 %v453
        %494 = vmatpush1.bf16.msra.mxu0 %v452
        %495 = vmatprep.subr.bf16.mxu0 0
        %496 = vmatpush1.bf16.msra.mxu0 0
        %497 = vmatprep.subr.bf16.mxu0 0
        %498 = vmatpush1.bf16.msra.mxu0 0
        %499 = vmatprep.subr.bf16.mxu0 0
        %500 = vmatpush1.bf16.msra.mxu0 0
        %501 = vmatprep.subr.bf16.mxu0 0
        %502 = vmatpush1.bf16.msra.mxu0 0
        %503 = vmatprep.subr.bf16.mxu0 0
        %504 = vmatpush1.bf16.msra.mxu0 0
        %505 = vmatprep.subr.bf16.mxu0 0
        %506 = vmatpush1.bf16.msra.mxu0 0
        %507 = vmatprep.subr.bf16.mxu0 0
        %508 = vmatpush1.bf16.msra.mxu0 0
        %509 = vmatprep.subr.bf16.mxu0 0
        %510 = vmatpush1.bf16.msra.mxu0 0
        %511 = vmatprep.subr.bf16.mxu0 0
        %512 = vmatpush1.bf16.msra.mxu0 0
        %513 = vmatprep.subr.bf16.mxu0 0
        %514 = vmatpush1.bf16.msra.mxu0 0
        %515 = vmatprep.subr.bf16.mxu0 0
        %516 = vmatpush1.bf16.msra.mxu0 0
        %517 = vmatprep.subr.bf16.mxu0 0
        %518 = vmatpush1.bf16.msra.mxu0 0
        %519 = vmatprep.mubr.bf16.mxu0 0
        %520 = vmatmul.mubr.bf16.gmra.mrb[0].mxu0 %v464
        %v521 = vpop.f32.mrb[0].mxu0
        %v522 = vadd.f32 0.0, %v521
        %v523 = vpop.f32.mrb[0].mxu0
        %v524 = vadd.f32 0.0, %v523
        %v525 = vpop.f32.mrb[0].mxu0
        %v526 = vadd.f32 0.0, %v525
        %v527 = vpop.f32.mrb[0].mxu0
        %v528 = vadd.f32 0.0, %v527
        %529 = vmatprep.mubr.bf16.mxu0 0
        %530 = vmatmul.mubr.bf16.gmra.mrb[0].mxu0 %v467
        %v531 = vpop.f32.mrb[0].mxu0
        %v532 = vadd.f32 0.0, %v531
        %v533 = vpop.f32.mrb[0].mxu0
        %v534 = vadd.f32 0.0, %v533
        %v535 = vpop.f32.mrb[0].mxu0
        %v536 = vadd.f32 0.0, %v535
        %v537 = vpop.f32.mrb[0].mxu0
        %v538 = vadd.f32 0.0, %v537
        %539 = vmatprep.mubr.bf16.mxu0 0
        %540 = vmatmul.mubr.bf16.gmra.mrb[0].mxu0 %v470
        %v541 = vpop.f32.mrb[0].mxu0
        %v542 = vadd.f32 0.0, %v541
        %v543 = vpop.f32.mrb[0].mxu0
        %v544 = vadd.f32 0.0, %v543
        %v545 = vpop.f32.mrb[0].mxu0
        %v546 = vadd.f32 0.0, %v545
        %v547 = vpop.f32.mrb[0].mxu0
        %v548 = vadd.f32 0.0, %v547
        %549 = vmatprep.mubr.bf16.mxu0 0
        %550 = vmatmul.mubr.bf16.gmra.mrb[0].mxu0 %v473
        %v551 = vpop.f32.mrb[0].mxu0
        %v552 = vadd.f32 0.0, %v551
        %v553 = vpop.f32.mrb[0].mxu0
        %v554 = vadd.f32 0.0, %v553
        %v555 = vpop.f32.mrb[0].mxu0
        %v556 = vadd.f32 0.0, %v555
        %v557 = vpop.f32.mrb[0].mxu0
        %v558 = vadd.f32 0.0, %v557
        %559 = vmatprep.mubr.bf16.mxu0 0
        %560 = vmatmul.mubr.bf16.gmra.mrb[0].mxu0 %v476
        %v561 = vpop.f32.mrb[0].mxu0
        %v562 = vadd.f32 0.0, %v561
        %v563 = vpop.f32.mrb[0].mxu0
        %v564 = vadd.f32 0.0, %v563
        %v565 = vpop.f32.mrb[0].mxu0
        %v566 = vadd.f32 0.0, %v565
        %v567 = vpop.f32.mrb[0].mxu0
        %v568 = vadd.f32 0.0, %v567
        %569 = vmatprep.mubr.bf16.mxu0 0
        %570 = vmatmul.mubr.bf16.gmra.mrb[0].mxu0 %v479
        %v571 = vpop.f32.mrb[0].mxu0
        %v572 = vadd.f32 0.0, %v571
        %v573 = vpop.f32.mrb[0].mxu0
        %v574 = vadd.f32 0.0, %v573
        %v575 = vpop.f32.mrb[0].mxu0
        %v576 = vadd.f32 0.0, %v575
        %v577 = vpop.f32.mrb[0].mxu0
        %v578 = vadd.f32 0.0, %v577
        %579 = vmatprep.mubr.bf16.mxu0 0
        %580 = vmatmul.mubr.bf16.gmra.mrb[0].mxu0 %v482
        %v581 = vpop.f32.mrb[0].mxu0
        %v582 = vadd.f32 0.0, %v581
        %v583 = vpop.f32.mrb[0].mxu0
        %v584 = vadd.f32 0.0, %v583
        %v585 = vpop.f32.mrb[0].mxu0
        %v586 = vadd.f32 0.0, %v585
        %v587 = vpop.f32.mrb[0].mxu0
        %v588 = vadd.f32 0.0, %v587
        %589 = vmatprep.mubr.bf16.mxu0 0
        %590 = vmatmul.mubr.bf16.gmra.mrb[0].mxu0 %v485
        %v591 = vpop.f32.mrb[0].mxu0
        %v592 = vadd.f32 0.0, %v591
        %v593 = vpop.f32.mrb[0].mxu0
        %v594 = vadd.f32 0.0, %v593
        %v595 = vpop.f32.mrb[0].mxu0
        %v596 = vadd.f32 0.0, %v595
        %v597 = vpop.f32.mrb[0].mxu0
        %v598 = vadd.f32 0.0, %v597
        %599 = vdwg.mxu0
        %v600 = vld [vmem:[%s285] sm:$0xff]
        %v601 = vld [vmem:[%s285 + $0x8] sm:$0xff]
        %v604 = vcombine.low %v600, %v601
        %v605 = vcombine.high %v600, %v601
        %v607 = vunpack.c.l.s4 1966171168
        %v608 = vunpack.c.0.s8 %v607
        %v609 = vlaneseq
        %v610 = vshrl.u32 %v609, 7
        %v611 = vsub.s32 %v608, %v610
        %v612 = vrot.slane %v604, %v611
        %v614 = vunpack.c.l.s4 1966171168
        %v615 = vunpack.c.0.s8 %v614
        %v616 = vlaneseq
        %v617 = vshrl.u32 %v616, 7
        %v618 = vsub.s32 %v615, %v617
        %v619 = vrot.slane %v605, %v618
        %v620 = vcombine.high %v612, %v612
        %v621 = vcombine.high %v619, %v619
        %v623 = vunpack.c.l.s4 1966171168
        %v624 = vunpack.c.0.s8 %v623
        %v625 = vlaneseq
        %v626 = vshrl.u32 %v625, 7
        %v627 = vsub.s32 %v624, %v626
        %v628 = vrot.slane %v612, %v627
        %v630 = vunpack.c.l.s4 1966171168
        %v631 = vunpack.c.0.s8 %v630
        %v632 = vlaneseq
        %v633 = vshrl.u32 %v632, 7
        %v634 = vsub.s32 %v631, %v633
        %v635 = vrot.slane %v619, %v634
        %v637 = vunpack.c.l.s4 1966171168
        %v638 = vunpack.c.0.s8 %v637
        %v639 = vlaneseq
        %v640 = vshrl.u32 %v639, 7
        %v641 = vsub.s32 %v638, %v640
        %v642 = vrot.slane %v620, %v641
        %v644 = vunpack.c.l.s4 1966171168
        %v645 = vunpack.c.0.s8 %v644
        %v646 = vlaneseq
        %v647 = vshrl.u32 %v646, 7
        %v648 = vsub.s32 %v645, %v647
        %v649 = vrot.slane %v621, %v648
        %v650 = vcombine.high %v628, %v628
        %v651 = vcombine.high %v635, %v635
        %v652 = vcombine.high %v642, %v642
        %v653 = vcombine.high %v649, %v649
        %v654 = vlaneseq
        %v655 = vshrl.u32 %v654, 7
        %v656 = vsub.s32 0, %v655
        %v657 = vrot.slane %v628, %v656
        %v658 = vlaneseq
        %v659 = vshrl.u32 %v658, 7
        %v660 = vsub.s32 1, %v659
        %v661 = vrot.slane %v628, %v660
        %v662 = vlaneseq
        %v663 = vshrl.u32 %v662, 7
        %v664 = vsub.s32 0, %v663
        %v665 = vrot.slane %v642, %v664
        %v666 = vlaneseq
        %v667 = vshrl.u32 %v666, 7
        %v668 = vsub.s32 1, %v667
        %v669 = vrot.slane %v642, %v668
        %v670 = vlaneseq
        %v671 = vshrl.u32 %v670, 7
        %v672 = vsub.s32 0, %v671
        %v673 = vrot.slane %v650, %v672
        %v674 = vlaneseq
        %v675 = vshrl.u32 %v674, 7
        %v676 = vsub.s32 1, %v675
        %v677 = vrot.slane %v650, %v676
        %v678 = vlaneseq
        %v679 = vshrl.u32 %v678, 7
        %v680 = vsub.s32 0, %v679
        %v681 = vrot.slane %v652, %v680
        %v682 = vlaneseq
        %v683 = vshrl.u32 %v682, 7
        %v684 = vsub.s32 1, %v683
        %v685 = vrot.slane %v652, %v684
        %v686 = vlaneseq
        %v687 = vshrl.u32 %v686, 7
        %v688 = vsub.s32 0, %v687
        %v689 = vrot.slane %v635, %v688
        %v690 = vlaneseq
        %v691 = vshrl.u32 %v690, 7
        %v692 = vsub.s32 1, %v691
        %v693 = vrot.slane %v635, %v692
        %v694 = vlaneseq
        %v695 = vshrl.u32 %v694, 7
        %v696 = vsub.s32 0, %v695
        %v697 = vrot.slane %v649, %v696
        %v698 = vlaneseq
        %v699 = vshrl.u32 %v698, 7
        %v700 = vsub.s32 1, %v699
        %v701 = vrot.slane %v649, %v700
        %v702 = vlaneseq
        %v703 = vshrl.u32 %v702, 7
        %v704 = vsub.s32 0, %v703
        %v705 = vrot.slane %v651, %v704
        %v706 = vlaneseq
        %v707 = vshrl.u32 %v706, 7
        %v708 = vsub.s32 1, %v707
        %v709 = vrot.slane %v651, %v708
        %v710 = vlaneseq
        %v711 = vshrl.u32 %v710, 7
        %v712 = vsub.s32 0, %v711
        %v713 = vrot.slane %v653, %v712
        %v714 = vlaneseq
        %v715 = vshrl.u32 %v714, 7
        %v716 = vsub.s32 1, %v715
        %v717 = vrot.slane %v653, %v716
        %v734 = vadd.f32 %v522, %v657
        %v735 = vadd.f32 %v524, %v661
        %v736 = vadd.f32 %v526, %v657
        %v737 = vadd.f32 %v528, %v661
        %v738 = vadd.f32 %v532, %v665
        %v739 = vadd.f32 %v534, %v669
        %v740 = vadd.f32 %v536, %v665
        %v741 = vadd.f32 %v538, %v669
        %v742 = vadd.f32 %v542, %v673
        %v743 = vadd.f32 %v544, %v677
        %v744 = vadd.f32 %v546, %v673
        %v745 = vadd.f32 %v548, %v677
        %v746 = vadd.f32 %v552, %v681
        %v747 = vadd.f32 %v554, %v685
        %v748 = vadd.f32 %v556, %v681
        %v749 = vadd.f32 %v558, %v685
        %v750 = vadd.f32 %v562, %v689
        %v751 = vadd.f32 %v564, %v693
        %v752 = vadd.f32 %v566, %v689
        %v753 = vadd.f32 %v568, %v693
        %v754 = vadd.f32 %v572, %v697
        %v755 = vadd.f32 %v574, %v701
        %v756 = vadd.f32 %v576, %v697
        %v757 = vadd.f32 %v578, %v701
        %v758 = vadd.f32 %v582, %v705
        %v759 = vadd.f32 %v584, %v709
        %v760 = vadd.f32 %v586, %v705
        %v761 = vadd.f32 %v588, %v709
        %v762 = vadd.f32 %v592, %v713
        %v763 = vadd.f32 %v594, %v717
        %v764 = vadd.f32 %v596, %v713
        %v765 = vadd.f32 %v598, %v717
        %v766 = vtanh.pop %v734
        %v767 = vtanh.pop %v735
        %v768 = vtanh.pop %v736
        %v769 = vtanh.pop %v737
        %v770 = vtanh.pop %v738
        %v771 = vtanh.pop %v739
        %v772 = vtanh.pop %v740
        %v773 = vtanh.pop %v741
        %v774 = vtanh.pop %v742
        %v775 = vtanh.pop %v743
        %v776 = vtanh.pop %v744
        %v777 = vtanh.pop %v745
        %v778 = vtanh.pop %v746
        %v779 = vtanh.pop %v747
        %v780 = vtanh.pop %v748
        %v781 = vtanh.pop %v749
        %v782 = vtanh.pop %v750
        %v783 = vtanh.pop %v751
        %v784 = vtanh.pop %v752
        %v785 = vtanh.pop %v753
        %v786 = vtanh.pop %v754
        %v787 = vtanh.pop %v755
        %v788 = vtanh.pop %v756
        %v789 = vtanh.pop %v757
        %v790 = vtanh.pop %v758
        %v791 = vtanh.pop %v759
        %v792 = vtanh.pop %v760
        %v793 = vtanh.pop %v761
        %v794 = vtanh.pop %v762
        %v795 = vtanh.pop %v763
        %v796 = vtanh.pop %v764
        %v797 = vtanh.pop %v765
        %v798 = vld [vmem:[%s5] sm:$0x3]
        %v800 = vlaneseq
        %v801 = vshrl.u32 %v800, 7
        %v802 = vsub.s32 0, %v801
        %v803 = vrot.slane %v798, %v802
        %v804 = vlaneseq
        %v805 = vshrl.u32 %v804, 7
        %v806 = vsub.s32 1, %v805
        %v807 = vrot.slane %v798, %v806
        %v810 = vmul.f32 %v766, %v803
        %v811 = vmul.f32 %v767, %v807
        %v812 = vmul.f32 %v768, %v803
        %v813 = vmul.f32 %v769, %v807
        %v814 = vmul.f32 %v770, %v803
        %v815 = vmul.f32 %v771, %v807
        %v816 = vmul.f32 %v772, %v803
        %v817 = vmul.f32 %v773, %v807
        %v818 = vmul.f32 %v774, %v803
        %v819 = vmul.f32 %v775, %v807
        %v820 = vmul.f32 %v776, %v803
        %v821 = vmul.f32 %v777, %v807
        %v822 = vmul.f32 %v778, %v803
        %v823 = vmul.f32 %v779, %v807
        %v824 = vmul.f32 %v780, %v803
        %v825 = vmul.f32 %v781, %v807
        %v826 = vmul.f32 %v782, %v803
        %v827 = vmul.f32 %v783, %v807
        %v828 = vmul.f32 %v784, %v803
        %v829 = vmul.f32 %v785, %v807
        %v830 = vmul.f32 %v786, %v803
        %v831 = vmul.f32 %v787, %v807
        %v832 = vmul.f32 %v788, %v803
        %v833 = vmul.f32 %v789, %v807
        %v834 = vmul.f32 %v790, %v803
        %v835 = vmul.f32 %v791, %v807
        %v836 = vmul.f32 %v792, %v803
        %v837 = vmul.f32 %v793, %v807
        %v838 = vmul.f32 %v794, %v803
        %v839 = vmul.f32 %v795, %v807
        %v840 = vmul.f32 %v796, %v803
        %v841 = vmul.f32 %v797, %v807
        %v842 = vadd.f32 %v810, %v811
        %843 = vadd.xlane.f32.xlu0 %v842
        %v844 = vpop.xlane.xlu0 %843
        %v845 = vadd.f32 %v812, %v813
        %846 = vadd.xlane.f32.xlu0 %v845
        %v847 = vpop.xlane.xlu0 %846
        %v848 = vadd.f32 %v814, %v815
        %849 = vadd.xlane.f32.xlu0 %v848
        %v850 = vpop.xlane.xlu0 %849
        %v851 = vadd.f32 %v816, %v817
        %852 = vadd.xlane.f32.xlu0 %v851
        %v853 = vpop.xlane.xlu0 %852
        %v854 = vadd.f32 %v818, %v819
        %855 = vadd.xlane.f32.xlu0 %v854
        %v856 = vpop.xlane.xlu0 %855
        %v857 = vadd.f32 %v820, %v821
        %858 = vadd.xlane.f32.xlu0 %v857
        %v859 = vpop.xlane.xlu0 %858
        %v860 = vadd.f32 %v822, %v823
        %861 = vadd.xlane.f32.xlu0 %v860
        %v862 = vpop.xlane.xlu0 %861
        %v863 = vadd.f32 %v824, %v825
        %864 = vadd.xlane.f32.xlu0 %v863
        %v865 = vpop.xlane.xlu0 %864
        %v866 = vadd.f32 %v826, %v827
        %867 = vadd.xlane.f32.xlu0 %v866
        %v868 = vpop.xlane.xlu0 %867
        %v869 = vadd.f32 %v828, %v829
        %870 = vadd.xlane.f32.xlu0 %v869
        %v871 = vpop.xlane.xlu0 %870
        %v872 = vadd.f32 %v830, %v831
        %873 = vadd.xlane.f32.xlu0 %v872
        %v874 = vpop.xlane.xlu0 %873
        %v875 = vadd.f32 %v832, %v833
        %876 = vadd.xlane.f32.xlu0 %v875
        %v877 = vpop.xlane.xlu0 %876
        %v878 = vadd.f32 %v834, %v835
        %879 = vadd.xlane.f32.xlu0 %v878
        %v880 = vpop.xlane.xlu0 %879
        %v881 = vadd.f32 %v836, %v837
        %882 = vadd.xlane.f32.xlu0 %v881
        %v883 = vpop.xlane.xlu0 %882
        %v884 = vadd.f32 %v838, %v839
        %885 = vadd.xlane.f32.xlu0 %v884
        %v886 = vpop.xlane.xlu0 %885
        %v887 = vadd.f32 %v840, %v841
        %888 = vadd.xlane.f32.xlu0 %v887
        %v889 = vpop.xlane.xlu0 %888
        %v906 = vlaneseq
        %v907 = vshrl.u32 %v906, 7
        %v908 = vsub.s32 %v309, %v907
        %v909 = vrot.slane %v844, %v908
        %v910 = vadd.s32 %v309, 4294967288
        %v911 = vlaneseq
        %v912 = vshrl.u32 %v911, 7
        %v913 = vsub.s32 %v910, %v912
        %v914 = vrot.slane %v847, %v913
        %vm915 = vcmask 130112
        %v916 = vsel %vm915, %v914, %v909
        %v917 = vlaneseq
        %v918 = vshrl.u32 %v917, 7
        %v919 = vsub.s32 %v309, %v918
        %v920 = vrot.slane %v850, %v919
        %v921 = vlaneseq
        %v922 = vshrl.u32 %v921, 7
        %v923 = vsub.s32 %v910, %v922
        %v924 = vrot.slane %v853, %v923
        %v925 = vsel %vm915, %v924, %v920
        %v926 = vlaneseq
        %v927 = vshrl.u32 %v926, 7
        %v928 = vsub.s32 %v309, %v927
        %v929 = vrot.slane %v856, %v928
        %v930 = vlaneseq
        %v931 = vshrl.u32 %v930, 7
        %v932 = vsub.s32 %v910, %v931
        %v933 = vrot.slane %v859, %v932
        %v934 = vsel %vm915, %v933, %v929
        %v935 = vlaneseq
        %v936 = vshrl.u32 %v935, 7
        %v937 = vsub.s32 %v309, %v936
        %v938 = vrot.slane %v862, %v937
        %v939 = vlaneseq
        %v940 = vshrl.u32 %v939, 7
        %v941 = vsub.s32 %v910, %v940
        %v942 = vrot.slane %v865, %v941
        %v943 = vsel %vm915, %v942, %v938
        %v944 = vlaneseq
        %v945 = vshrl.u32 %v944, 7
        %v946 = vsub.s32 %v309, %v945
        %v947 = vrot.slane %v868, %v946
        %v948 = vlaneseq
        %v949 = vshrl.u32 %v948, 7
        %v950 = vsub.s32 %v910, %v949
        %v951 = vrot.slane %v871, %v950
        %v952 = vsel %vm915, %v951, %v947
        %v953 = vlaneseq
        %v954 = vshrl.u32 %v953, 7
        %v955 = vsub.s32 %v309, %v954
        %v956 = vrot.slane %v874, %v955
        %v957 = vlaneseq
        %v958 = vshrl.u32 %v957, 7
        %v959 = vsub.s32 %v910, %v958
        %v960 = vrot.slane %v877, %v959
        %v961 = vsel %vm915, %v960, %v956
        %v962 = vlaneseq
        %v963 = vshrl.u32 %v962, 7
        %v964 = vsub.s32 %v309, %v963
        %v965 = vrot.slane %v880, %v964
        %v966 = vlaneseq
        %v967 = vshrl.u32 %v966, 7
        %v968 = vsub.s32 %v910, %v967
        %v969 = vrot.slane %v883, %v968
        %v970 = vsel %vm915, %v969, %v965
        %v971 = vlaneseq
        %v972 = vshrl.u32 %v971, 7
        %v973 = vsub.s32 %v309, %v972
        %v974 = vrot.slane %v886, %v973
        %v975 = vlaneseq
        %v976 = vshrl.u32 %v975, 7
        %v977 = vsub.s32 %v910, %v976
        %v978 = vrot.slane %v889, %v977
        %v979 = vsel %vm915, %v978, %v974
        %vm980 = vcmask 1041409
        %v981 = vsel %vm980, %v925, %v916
        %vm982 = vcmask 1042434
        %v983 = vsel %vm982, %v934, %v981
        %vm984 = vcmask 1043459
        %v985 = vsel %vm984, %v943, %v983
        %vm986 = vcmask 1044484
        %v987 = vsel %vm986, %v952, %v985
        %vm988 = vcmask 1045509
        %v989 = vsel %vm988, %v961, %v987
        %vm990 = vcmask 1046534
        %v991 = vsel %vm990, %v970, %v989
        %vm992 = vcmask 1047559
        %v993 = vsel %vm992, %v979, %v991
        %vm995 = vcmask 130048
        %v996 = vsel %vm995, %v993, -inf
        %997 = vmax.xlane.f32.xlu0 %v996
        %v998 = vpop.xlane.xlu0 %997
        %v1000 = vlaneseq
        %v1001 = vshrl.u32 %v1000, 7
        %v1002 = vsub.s32 0, %v1001
        %v1003 = vrot.slane %v998, %v1002
        %v1004 = vlaneseq
        %v1005 = vshrl.u32 %v1004, 7
        %v1006 = vsub.s32 1, %v1005
        %v1007 = vrot.slane %v998, %v1006
        %v1008 = vlaneseq
        %v1009 = vshrl.u32 %v1008, 7
        %v1010 = vsub.s32 2, %v1009
        %v1011 = vrot.slane %v998, %v1010
        %v1012 = vlaneseq
        %v1013 = vshrl.u32 %v1012, 7
        %v1014 = vsub.s32 3, %v1013
        %v1015 = vrot.slane %v998, %v1014
        %v1016 = vlaneseq
        %v1017 = vshrl.u32 %v1016, 7
        %v1018 = vsub.s32 4, %v1017
        %v1019 = vrot.slane %v998, %v1018
        %v1020 = vlaneseq
        %v1021 = vshrl.u32 %v1020, 7
        %v1022 = vsub.s32 5, %v1021
        %v1023 = vrot.slane %v998, %v1022
        %v1024 = vlaneseq
        %v1025 = vshrl.u32 %v1024, 7
        %v1026 = vsub.s32 6, %v1025
        %v1027 = vrot.slane %v998, %v1026
        %v1028 = vlaneseq
        %v1029 = vshrl.u32 %v1028, 7
        %v1030 = vsub.s32 7, %v1029
        %v1031 = vrot.slane %v998, %v1030
        %v1040 = vsub.f32 %v844, %v1003
        %v1041 = vsub.f32 %v847, %v1003
        %v1042 = vsub.f32 %v850, %v1007
        %v1043 = vsub.f32 %v853, %v1007
        %v1044 = vsub.f32 %v856, %v1011
        %v1045 = vsub.f32 %v859, %v1011
        %v1046 = vsub.f32 %v862, %v1015
        %v1047 = vsub.f32 %v865, %v1015
        %v1048 = vsub.f32 %v868, %v1019
        %v1049 = vsub.f32 %v871, %v1019
        %v1050 = vsub.f32 %v874, %v1023
        %v1051 = vsub.f32 %v877, %v1023
        %v1052 = vsub.f32 %v880, %v1027
        %v1053 = vsub.f32 %v883, %v1027
        %v1054 = vsub.f32 %v886, %v1031
        %v1055 = vsub.f32 %v889, %v1031
        %v1056 = vmul.f32 %v1040, 1.442695
        %v1057 = vpow.pop %v1056
        %v1058 = vmul.f32 %v1041, 1.442695
        %v1059 = vpow.pop %v1058
        %v1060 = vmul.f32 %v1042, 1.442695
        %v1061 = vpow.pop %v1060
        %v1062 = vmul.f32 %v1043, 1.442695
        %v1063 = vpow.pop %v1062
        %v1064 = vmul.f32 %v1044, 1.442695
        %v1065 = vpow.pop %v1064
        %v1066 = vmul.f32 %v1045, 1.442695
        %v1067 = vpow.pop %v1066
        %v1068 = vmul.f32 %v1046, 1.442695
        %v1069 = vpow.pop %v1068
        %v1070 = vmul.f32 %v1047, 1.442695
        %v1071 = vpow.pop %v1070
        %v1072 = vmul.f32 %v1048, 1.442695
        %v1073 = vpow.pop %v1072
        %v1074 = vmul.f32 %v1049, 1.442695
        %v1075 = vpow.pop %v1074
        %v1076 = vmul.f32 %v1050, 1.442695
        %v1077 = vpow.pop %v1076
        %v1078 = vmul.f32 %v1051, 1.442695
        %v1079 = vpow.pop %v1078
        %v1080 = vmul.f32 %v1052, 1.442695
        %v1081 = vpow.pop %v1080
        %v1082 = vmul.f32 %v1053, 1.442695
        %v1083 = vpow.pop %v1082
        %v1084 = vmul.f32 %v1054, 1.442695
        %v1085 = vpow.pop %v1084
        %v1086 = vmul.f32 %v1055, 1.442695
        %v1087 = vpow.pop %v1086
        %1104 = vset.pattern.permute.xlu0 0
        %1105 = vperm.xlu0 %1104, %v1057
        %v1106 = vpop.permute.xlu0 %1105
        %1107 = vset.pattern.permute.xlu0 0
        %1108 = vperm.xlu0 %1107, %v1059
        %v1109 = vpop.permute.xlu0 %1108
        %1110 = vset.pattern.permute.xlu0 0
        %1111 = vperm.xlu0 %1110, %v1061
        %v1112 = vpop.permute.xlu0 %1111
        %1113 = vset.pattern.permute.xlu0 0
        %1114 = vperm.xlu0 %1113, %v1063
        %v1115 = vpop.permute.xlu0 %1114
        %1116 = vset.pattern.permute.xlu0 0
        %1117 = vperm.xlu0 %1116, %v1065
        %v1118 = vpop.permute.xlu0 %1117
        %1119 = vset.pattern.permute.xlu0 0
        %1120 = vperm.xlu0 %1119, %v1067
        %v1121 = vpop.permute.xlu0 %1120
        %1122 = vset.pattern.permute.xlu0 0
        %1123 = vperm.xlu0 %1122, %v1069
        %v1124 = vpop.permute.xlu0 %1123
        %1125 = vset.pattern.permute.xlu0 0
        %1126 = vperm.xlu0 %1125, %v1071
        %v1127 = vpop.permute.xlu0 %1126
        %1128 = vset.pattern.permute.xlu0 0
        %1129 = vperm.xlu0 %1128, %v1073
        %v1130 = vpop.permute.xlu0 %1129
        %1131 = vset.pattern.permute.xlu0 0
        %1132 = vperm.xlu0 %1131, %v1075
        %v1133 = vpop.permute.xlu0 %1132
        %1134 = vset.pattern.permute.xlu0 0
        %1135 = vperm.xlu0 %1134, %v1077
        %v1136 = vpop.permute.xlu0 %1135
        %1137 = vset.pattern.permute.xlu0 0
        %1138 = vperm.xlu0 %1137, %v1079
        %v1139 = vpop.permute.xlu0 %1138
        %1140 = vset.pattern.permute.xlu0 0
        %1141 = vperm.xlu0 %1140, %v1081
        %v1142 = vpop.permute.xlu0 %1141
        %1143 = vset.pattern.permute.xlu0 0
        %1144 = vperm.xlu0 %1143, %v1083
        %v1145 = vpop.permute.xlu0 %1144
        %1146 = vset.pattern.permute.xlu0 0
        %1147 = vperm.xlu0 %1146, %v1085
        %v1148 = vpop.permute.xlu0 %1147
        %1149 = vset.pattern.permute.xlu0 0
        %1150 = vperm.xlu0 %1149, %v1087
        %v1151 = vpop.permute.xlu0 %1150
        %v1152 = vlaneseq
        %v1153 = vshrl.u32 %v1152, 7
        %v1154 = vsub.s32 %v309, %v1153
        %v1155 = vrot.slane %v1106, %v1154
        %v1156 = vlaneseq
        %v1157 = vshrl.u32 %v1156, 7
        %v1158 = vsub.s32 %v910, %v1157
        %v1159 = vrot.slane %v1109, %v1158
        %v1160 = vsel %vm915, %v1159, %v1155
        %v1161 = vlaneseq
        %v1162 = vshrl.u32 %v1161, 7
        %v1163 = vsub.s32 %v309, %v1162
        %v1164 = vrot.slane %v1112, %v1163
        %v1165 = vlaneseq
        %v1166 = vshrl.u32 %v1165, 7
        %v1167 = vsub.s32 %v910, %v1166
        %v1168 = vrot.slane %v1115, %v1167
        %v1169 = vsel %vm915, %v1168, %v1164
        %v1170 = vlaneseq
        %v1171 = vshrl.u32 %v1170, 7
        %v1172 = vsub.s32 %v309, %v1171
        %v1173 = vrot.slane %v1118, %v1172
        %v1174 = vlaneseq
        %v1175 = vshrl.u32 %v1174, 7
        %v1176 = vsub.s32 %v910, %v1175
        %v1177 = vrot.slane %v1121, %v1176
        %v1178 = vsel %vm915, %v1177, %v1173
        %v1179 = vlaneseq
        %v1180 = vshrl.u32 %v1179, 7
        %v1181 = vsub.s32 %v309, %v1180
        %v1182 = vrot.slane %v1124, %v1181
        %v1183 = vlaneseq
        %v1184 = vshrl.u32 %v1183, 7
        %v1185 = vsub.s32 %v910, %v1184
        %v1186 = vrot.slane %v1127, %v1185
        %v1187 = vsel %vm915, %v1186, %v1182
        %v1188 = vlaneseq
        %v1189 = vshrl.u32 %v1188, 7
        %v1190 = vsub.s32 %v309, %v1189
        %v1191 = vrot.slane %v1130, %v1190
        %v1192 = vlaneseq
        %v1193 = vshrl.u32 %v1192, 7
        %v1194 = vsub.s32 %v910, %v1193
        %v1195 = vrot.slane %v1133, %v1194
        %v1196 = vsel %vm915, %v1195, %v1191
        %v1197 = vlaneseq
        %v1198 = vshrl.u32 %v1197, 7
        %v1199 = vsub.s32 %v309, %v1198
        %v1200 = vrot.slane %v1136, %v1199
        %v1201 = vlaneseq
        %v1202 = vshrl.u32 %v1201, 7
        %v1203 = vsub.s32 %v910, %v1202
        %v1204 = vrot.slane %v1139, %v1203
        %v1205 = vsel %vm915, %v1204, %v1200
        %v1206 = vlaneseq
        %v1207 = vshrl.u32 %v1206, 7
        %v1208 = vsub.s32 %v309, %v1207
        %v1209 = vrot.slane %v1142, %v1208
        %v1210 = vlaneseq
        %v1211 = vshrl.u32 %v1210, 7
        %v1212 = vsub.s32 %v910, %v1211
        %v1213 = vrot.slane %v1145, %v1212
        %v1214 = vsel %vm915, %v1213, %v1209
        %v1215 = vlaneseq
        %v1216 = vshrl.u32 %v1215, 7
        %v1217 = vsub.s32 %v309, %v1216
        %v1218 = vrot.slane %v1148, %v1217
        %v1219 = vlaneseq
        %v1220 = vshrl.u32 %v1219, 7
        %v1221 = vsub.s32 %v910, %v1220
        %v1222 = vrot.slane %v1151, %v1221
        %v1223 = vsel %vm915, %v1222, %v1218
        %v1224 = vsel %vm980, %v1169, %v1160
        %v1225 = vsel %vm982, %v1178, %v1224
        %v1226 = vsel %vm984, %v1187, %v1225
        %v1227 = vsel %vm986, %v1196, %v1226
        %v1228 = vsel %vm988, %v1205, %v1227
        %v1229 = vsel %vm990, %v1214, %v1228
        %v1230 = vsel %vm992, %v1223, %v1229
        %v1232 = vsel %vm995, %v1230, 0.0
        %1233 = vadd.xlane.f32.xlu0 %v1232
        %v1234 = vpop.xlane.xlu0 %1233
        %v1235 = vrcp.pop %v1234
        %v1237 = vlaneseq
        %v1238 = vshrl.u32 %v1237, 7
        %v1239 = vsub.s32 0, %v1238
        %v1240 = vrot.slane %v1235, %v1239
        %v1241 = vlaneseq
        %v1242 = vshrl.u32 %v1241, 7
        %v1243 = vsub.s32 1, %v1242
        %v1244 = vrot.slane %v1235, %v1243
        %v1245 = vlaneseq
        %v1246 = vshrl.u32 %v1245, 7
        %v1247 = vsub.s32 2, %v1246
        %v1248 = vrot.slane %v1235, %v1247
        %v1249 = vlaneseq
        %v1250 = vshrl.u32 %v1249, 7
        %v1251 = vsub.s32 3, %v1250
        %v1252 = vrot.slane %v1235, %v1251
        %v1253 = vlaneseq
        %v1254 = vshrl.u32 %v1253, 7
        %v1255 = vsub.s32 4, %v1254
        %v1256 = vrot.slane %v1235, %v1255
        %v1257 = vlaneseq
        %v1258 = vshrl.u32 %v1257, 7
        %v1259 = vsub.s32 5, %v1258
        %v1260 = vrot.slane %v1235, %v1259
        %v1261 = vlaneseq
        %v1262 = vshrl.u32 %v1261, 7
        %v1263 = vsub.s32 6, %v1262
        %v1264 = vrot.slane %v1235, %v1263
        %v1265 = vlaneseq
        %v1266 = vshrl.u32 %v1265, 7
        %v1267 = vsub.s32 7, %v1266
        %v1268 = vrot.slane %v1235, %v1267
        %v1277 = vmul.f32 %v1057, %v1240
        %v1278 = vmul.f32 %v1059, %v1240
        %v1279 = vmul.f32 %v1061, %v1244
        %v1280 = vmul.f32 %v1063, %v1244
        %v1281 = vmul.f32 %v1065, %v1248
        %v1282 = vmul.f32 %v1067, %v1248
        %v1283 = vmul.f32 %v1069, %v1252
        %v1284 = vmul.f32 %v1071, %v1252
        %v1285 = vmul.f32 %v1073, %v1256
        %v1286 = vmul.f32 %v1075, %v1256
        %v1287 = vmul.f32 %v1077, %v1260
        %v1288 = vmul.f32 %v1079, %v1260
        %v1289 = vmul.f32 %v1081, %v1264
        %v1290 = vmul.f32 %v1083, %v1264
        %v1291 = vmul.f32 %v1085, %v1268
        %v1292 = vmul.f32 %v1087, %v1268
        %v1293 = vunpack.c.l.bf16 %v406
        %v1294 = vunpack.c.h.bf16 %v406
        %v1295 = vunpack.c.l.bf16 %v407
        %v1296 = vunpack.c.h.bf16 %v407
        %v1297 = vunpack.c.l.bf16 %v408
        %v1298 = vunpack.c.h.bf16 %v408
        %v1299 = vunpack.c.l.bf16 %v409
        %v1300 = vunpack.c.h.bf16 %v409
        %v1301 = vunpack.c.l.bf16 %v410
        %v1302 = vunpack.c.h.bf16 %v410
        %v1303 = vunpack.c.l.bf16 %v411
        %v1304 = vunpack.c.h.bf16 %v411
        %v1305 = vunpack.c.l.bf16 %v412
        %v1306 = vunpack.c.h.bf16 %v412
        %v1307 = vunpack.c.l.bf16 %v413
        %v1308 = vunpack.c.h.bf16 %v413
        %1310 = vset.pattern.permute.xlu0 0
        %1311 = vperm.xlu0 %1310, %v1277
        %v1312 = vpop.permute.xlu0 %1311
        %1315 = vset.pattern.permute.xlu0 0
        %1316 = vperm.xlu0 %1315, %v1278
        %v1317 = vpop.permute.xlu0 %1316
        %1320 = vset.pattern.permute.xlu0 0
        %1321 = vperm.xlu0 %1320, %v1279
        %v1322 = vpop.permute.xlu0 %1321
        %1325 = vset.pattern.permute.xlu0 0
        %1326 = vperm.xlu0 %1325, %v1280
        %v1327 = vpop.permute.xlu0 %1326
        %1330 = vset.pattern.permute.xlu0 0
        %1331 = vperm.xlu0 %1330, %v1281
        %v1332 = vpop.permute.xlu0 %1331
        %1335 = vset.pattern.permute.xlu0 0
        %1336 = vperm.xlu0 %1335, %v1282
        %v1337 = vpop.permute.xlu0 %1336
        %1340 = vset.pattern.permute.xlu0 0
        %1341 = vperm.xlu0 %1340, %v1283
        %v1342 = vpop.permute.xlu0 %1341
        %1345 = vset.pattern.permute.xlu0 0
        %1346 = vperm.xlu0 %1345, %v1284
        %v1347 = vpop.permute.xlu0 %1346
        %1350 = vset.pattern.permute.xlu0 0
        %1351 = vperm.xlu0 %1350, %v1285
        %v1352 = vpop.permute.xlu0 %1351
        %1355 = vset.pattern.permute.xlu0 0
        %1356 = vperm.xlu0 %1355, %v1286
        %v1357 = vpop.permute.xlu0 %1356
        %1360 = vset.pattern.permute.xlu0 0
        %1361 = vperm.xlu0 %1360, %v1287
        %v1362 = vpop.permute.xlu0 %1361
        %1365 = vset.pattern.permute.xlu0 0
        %1366 = vperm.xlu0 %1365, %v1288
        %v1367 = vpop.permute.xlu0 %1366
        %1370 = vset.pattern.permute.xlu0 0
        %1371 = vperm.xlu0 %1370, %v1289
        %v1372 = vpop.permute.xlu0 %1371
        %1375 = vset.pattern.permute.xlu0 0
        %1376 = vperm.xlu0 %1375, %v1290
        %v1377 = vpop.permute.xlu0 %1376
        %1380 = vset.pattern.permute.xlu0 0
        %1381 = vperm.xlu0 %1380, %v1291
        %v1382 = vpop.permute.xlu0 %1381
        %1385 = vset.pattern.permute.xlu0 0
        %1386 = vperm.xlu0 %1385, %v1292
        %v1387 = vpop.permute.xlu0 %1386
        %v1389 = vmul.f32 %v1312, %v1293
        %v1390 = vmul.f32 %v1317, %v1294
        %v1391 = vmul.f32 %v1322, %v1295
        %v1392 = vmul.f32 %v1327, %v1296
        %v1393 = vmul.f32 %v1332, %v1297
        %v1394 = vmul.f32 %v1337, %v1298
        %v1395 = vmul.f32 %v1342, %v1299
        %v1396 = vmul.f32 %v1347, %v1300
        %v1397 = vmul.f32 %v1352, %v1301
        %v1398 = vmul.f32 %v1357, %v1302
        %v1399 = vmul.f32 %v1362, %v1303
        %v1400 = vmul.f32 %v1367, %v1304
        %v1401 = vmul.f32 %v1372, %v1305
        %v1402 = vmul.f32 %v1377, %v1306
        %v1403 = vmul.f32 %v1382, %v1307
        %v1404 = vmul.f32 %v1387, %v1308
        %v1405 = vsel %vm462, %v1389, 0.0
        %v1406 = vsel %vm462, %v1390, 0.0
        %v1407 = vadd.f32 %v1405, %v1406
        %v1408 = vrot.slane %v1407, 4
        %v1409 = vadd.f32 %v1407, %v1408
        %v1410 = vrot.slane %v1409, 2
        %v1411 = vadd.f32 %v1409, %v1410
        %v1412 = vrot.slane %v1411, 1
        %v1413 = vadd.f32 %v1411, %v1412
        %v1414 = vsel %vm462, %v1391, 0.0
        %v1415 = vsel %vm462, %v1392, 0.0
        %v1416 = vadd.f32 %v1414, %v1415
        %v1417 = vrot.slane %v1416, 4
        %v1418 = vadd.f32 %v1416, %v1417
        %v1419 = vrot.slane %v1418, 2
        %v1420 = vadd.f32 %v1418, %v1419
        %v1421 = vrot.slane %v1420, 1
        %v1422 = vadd.f32 %v1420, %v1421
        %v1423 = vsel %vm462, %v1393, 0.0
        %v1424 = vsel %vm462, %v1394, 0.0
        %v1425 = vadd.f32 %v1423, %v1424
        %v1426 = vrot.slane %v1425, 4
        %v1427 = vadd.f32 %v1425, %v1426
        %v1428 = vrot.slane %v1427, 2
        %v1429 = vadd.f32 %v1427, %v1428
        %v1430 = vrot.slane %v1429, 1
        %v1431 = vadd.f32 %v1429, %v1430
        %v1432 = vsel %vm462, %v1395, 0.0
        %v1433 = vsel %vm462, %v1396, 0.0
        %v1434 = vadd.f32 %v1432, %v1433
        %v1435 = vrot.slane %v1434, 4
        %v1436 = vadd.f32 %v1434, %v1435
        %v1437 = vrot.slane %v1436, 2
        %v1438 = vadd.f32 %v1436, %v1437
        %v1439 = vrot.slane %v1438, 1
        %v1440 = vadd.f32 %v1438, %v1439
        %v1441 = vsel %vm462, %v1397, 0.0
        %v1442 = vsel %vm462, %v1398, 0.0
        %v1443 = vadd.f32 %v1441, %v1442
        %v1444 = vrot.slane %v1443, 4
        %v1445 = vadd.f32 %v1443, %v1444
        %v1446 = vrot.slane %v1445, 2
        %v1447 = vadd.f32 %v1445, %v1446
        %v1448 = vrot.slane %v1447, 1
        %v1449 = vadd.f32 %v1447, %v1448
        %v1450 = vsel %vm462, %v1399, 0.0
        %v1451 = vsel %vm462, %v1400, 0.0
        %v1452 = vadd.f32 %v1450, %v1451
        %v1453 = vrot.slane %v1452, 4
        %v1454 = vadd.f32 %v1452, %v1453
        %v1455 = vrot.slane %v1454, 2
        %v1456 = vadd.f32 %v1454, %v1455
        %v1457 = vrot.slane %v1456, 1
        %v1458 = vadd.f32 %v1456, %v1457
        %v1459 = vsel %vm462, %v1401, 0.0
        %v1460 = vsel %vm462, %v1402, 0.0
        %v1461 = vadd.f32 %v1459, %v1460
        %v1462 = vrot.slane %v1461, 4
        %v1463 = vadd.f32 %v1461, %v1462
        %v1464 = vrot.slane %v1463, 2
        %v1465 = vadd.f32 %v1463, %v1464
        %v1466 = vrot.slane %v1465, 1
        %v1467 = vadd.f32 %v1465, %v1466
        %v1468 = vsel %vm462, %v1403, 0.0
        %v1469 = vsel %vm462, %v1404, 0.0
        %v1470 = vadd.f32 %v1468, %v1469
        %v1471 = vrot.slane %v1470, 4
        %v1472 = vadd.f32 %v1470, %v1471
        %v1473 = vrot.slane %v1472, 2
        %v1474 = vadd.f32 %v1472, %v1473
        %v1475 = vrot.slane %v1474, 1
        %v1476 = vadd.f32 %v1474, %v1475
        %v1477 = vpack.c.bf16 %v1413, %v1413
        %v1478 = vpack.c.bf16 %v1422, %v1422
        %v1479 = vpack.c.bf16 %v1431, %v1431
        %v1480 = vpack.c.bf16 %v1440, %v1440
        %v1481 = vpack.c.bf16 %v1449, %v1449
        %v1482 = vpack.c.bf16 %v1458, %v1458
        %v1483 = vpack.c.bf16 %v1467, %v1467
        %v1484 = vpack.c.bf16 %v1476, %v1476
        %v1485 = vld [vmem:[%s2] sm:$0xff]
        %v1486 = vld [vmem:[%s2 + $0x8] sm:$0xff]
        %v1487 = vld [vmem:[%s2 + $0x10] sm:$0xff]
        %v1488 = vld [vmem:[%s2 + $0x18] sm:$0xff]
        %v1489 = vld [vmem:[%s2 + $0x20] sm:$0xff]
        %v1490 = vld [vmem:[%s2 + $0x28] sm:$0xff]
        %v1491 = vld [vmem:[%s2 + $0x30] sm:$0xff]
        %v1492 = vld [vmem:[%s2 + $0x38] sm:$0xff]
        %v1501 = vunpack.c.l.b16 %v1477
        %v1502 = vunpack.c.l.b16 %v1478
        %v1503 = vunpack.c.l.b16 %v1479
        %v1504 = vunpack.c.l.b16 %v1480
        %v1505 = vunpack.c.l.b16 %v1481
        %v1506 = vunpack.c.l.b16 %v1482
        %v1507 = vunpack.c.l.b16 %v1483
        %v1508 = vunpack.c.l.b16 %v1484
        %v1509 = vsel %vm980, %v1502, %v1501
        %v1510 = vsel %vm982, %v1503, %v1509
        %v1511 = vsel %vm984, %v1504, %v1510
        %v1512 = vsel %vm986, %v1505, %v1511
        %v1513 = vsel %vm988, %v1506, %v1512
        %v1514 = vsel %vm990, %v1507, %v1513
        %v1515 = vsel %vm992, %v1508, %v1514
        %v1516 = vpack.c.b16 %v1515, %v1515
        %v1525 = vunpack.c.l.b16 %v1485
        %v1526 = vunpack.c.h.b16 %v1485
        %v1527 = vunpack.c.l.b16 %v1486
        %v1528 = vunpack.c.h.b16 %v1486
        %v1529 = vunpack.c.l.b16 %v1487
        %v1530 = vunpack.c.h.b16 %v1487
        %v1531 = vunpack.c.l.b16 %v1488
        %v1532 = vunpack.c.h.b16 %v1488
        %v1533 = vunpack.c.l.b16 %v1489
        %v1534 = vunpack.c.h.b16 %v1489
        %v1535 = vunpack.c.l.b16 %v1490
        %v1536 = vunpack.c.h.b16 %v1490
        %v1537 = vunpack.c.l.b16 %v1491
        %v1538 = vunpack.c.h.b16 %v1491
        %v1539 = vunpack.c.l.b16 %v1492
        %v1540 = vunpack.c.h.b16 %v1492
        %v1541 = vpack.c.b16 %v1527, %v1525
        %v1542 = vpack.c.b16 %v1528, %v1526
        %v1543 = vpack.c.b16 %v1531, %v1529
        %v1544 = vpack.c.b16 %v1532, %v1530
        %v1545 = vpack.c.b16 %v1535, %v1533
        %v1546 = vpack.c.b16 %v1536, %v1534
        %v1547 = vpack.c.b16 %v1539, %v1537
        %v1548 = vpack.c.b16 %v1540, %v1538
        %v1558 = vsel %vm462, %v1516, 0
        %1560 = vmatprep.subr.bf16.mxu0 %v1542
        %1561 = vmatpush1.bf16.msra.mxu0 %v1541
        %1562 = vmatprep.subr.bf16.mxu0 %v1544
        %1563 = vmatpush1.bf16.msra.mxu0 %v1543
        %1564 = vmatprep.subr.bf16.mxu0 %v1546
        %1565 = vmatpush1.bf16.msra.mxu0 %v1545
        %1566 = vmatprep.subr.bf16.mxu0 %v1548
        %1567 = vmatpush1.bf16.msra.mxu0 %v1547
        %1568 = vmatprep.subr.bf16.mxu0 0
        %1569 = vmatpush1.bf16.msra.mxu0 0
        %1570 = vmatprep.subr.bf16.mxu0 0
        %1571 = vmatpush1.bf16.msra.mxu0 0
        %1572 = vmatprep.subr.bf16.mxu0 0
        %1573 = vmatpush1.bf16.msra.mxu0 0
        %1574 = vmatprep.subr.bf16.mxu0 0
        %1575 = vmatpush1.bf16.msra.mxu0 0
        %1576 = vmatprep.subr.bf16.mxu0 0
        %1577 = vmatpush1.bf16.msra.mxu0 0
        %1578 = vmatprep.subr.bf16.mxu0 0
        %1579 = vmatpush1.bf16.msra.mxu0 0
        %1580 = vmatprep.subr.bf16.mxu0 0
        %1581 = vmatpush1.bf16.msra.mxu0 0
        %1582 = vmatprep.subr.bf16.mxu0 0
        %1583 = vmatpush1.bf16.msra.mxu0 0
        %1584 = vmatprep.subr.bf16.mxu0 0
        %1585 = vmatpush1.bf16.msra.mxu0 0
        %1586 = vmatprep.subr.bf16.mxu0 0
        %1587 = vmatpush1.bf16.msra.mxu0 0
        %1588 = vmatprep.subr.bf16.mxu0 0
        %1589 = vmatpush1.bf16.msra.mxu0 0
        %1590 = vmatprep.subr.bf16.mxu0 0
        %1591 = vmatpush1.bf16.msra.mxu0 0
        %1592 = vmatprep.mubr.bf16.mxu0 0
        %1593 = vmatmul.mubr.bf16.gmra.mrb[0].mxu0 %v1558
        %v1594 = vpop.f32.mrb[0].mxu0
        %v1595 = vadd.f32 0.0, %v1594
        %v1596 = vpop.f32.mrb[0].mxu0
        %v1597 = vadd.f32 0.0, %v1596
        %v1598 = vpop.f32.mrb[0].mxu0
        %v1599 = vpop.f32.mrb[0].mxu0
        %1600 = vdwg.mxu0
        %v1601 = vld [vmem:[%s290] sm:$0xff]
        %v1602 = vld [vmem:[%s290 + $0x8] sm:$0xff]
        %v1603 = vmul.f32 %v1595, %v1601
        %v1604 = vmul.f32 %v1597, %v1602
        %v1605 = vadd.f32 %v1603, %v1604
        %1606 = vadd.xlane.f32.xlu0 %v1605
        %v1607 = vpop.xlane.xlu0 %1606
        %v1608 = vxor.u32 %v1607, 2147483648
        %v1609 = vmul.f32 %v1608, 1.442695
        %v1610 = vpow.pop %v1609
        %v1611 = vadd.f32 %v1610, 1.0
        %v1612 = vrcp.pop %v1611
        %v1613 = vmul.f32 1.0, %v1612
        %v1614 = vlaneseq
        %v1615 = vshrl.u32 %v1614, 7
        %vm1616 = vcmp.eq.s32.totalorder %v1615, %v309
        %v1617 = vsel %vm1616, %v1613, 0.0
        %vm1618 = vcmask 64512
        %v1619 = vsel %vm1618, %v1617, 0.0
        %v1620 = vrot.slane %v1619, 4
        %v1621 = vadd.f32 %v1619, %v1620
        %v1622 = vrot.slane %v1621, 2
        %v1623 = vadd.f32 %v1621, %v1622
        %v1624 = vrot.slane %v1623, 1
        %v1625 = vadd.f32 %v1623, %v1624
        %vm1626 = vcmask 57344
        %1627 = vst.msk [vmem:[%s274] sm:$0x1] %vm1626, %v1625
        %s1628 = sand.u32 %s169, 1
        %s1629 = scalar_lea.sflag [#allocation3], %s1628
        %s1630 = sand.u32 %s169, 1
        %s1631 = scalar_lea.vmem [#allocation2], %s1630
        // Predicated region
        $region45: #{tpu_custom_call.1} parent=43 // pred_check
          %p1632 = pneg %p179
        $region46: #{tpu_custom_call.1} parent=43 // pred_check_branch
          %1634 = sbr.rel (%p1632) target = $region48
        $region47: #{tpu_custom_call.1} parent=43 // pred_region
          %s1636 = ssub.s32 16, 16
          %1637 = vsyncadd %s1629, %s1636
          %s1638 = smul.addr %s20, 16
          %s1639 = scalar_lea.hbm %s6, %s1638
          %s1641 = sshll.u32 %s1631, 4
          %s1642 = int_to_ptr.vmem [resolvable:$true] %s1641
          %1644 = dma.vmem_to_hbm [thread:$0]  %s1642, 16, %s1639, %s1629
        $region48: #{tpu_custom_call.1} parent=43 // pred_fallthru
          _
      $region44: #{tpu_custom_call.1} parent=5 // pred_fallthru
        _
      %p1645 = scmp.le.s32.totalorder 2, %s15
      // Predicated region
      $region49: #{tpu_custom_call.1} parent=5 // pred_check
        %p1646 = pneg %p1645
      $region50: #{tpu_custom_call.1} parent=5 // pred_check_branch
        %1648 = sbr.rel (%p1646) target = $region52
      $region51: #{tpu_custom_call.1} parent=5 // pred_region
        %s1649 = ssub.s32 %s15, 2
        // Predicated region
        $region53: #{tpu_custom_call.1} parent=51 // pred_check
          %p1650 = pneg %p185
        $region54: #{tpu_custom_call.1} parent=51 // pred_check_branch
          %1652 = sbr.rel (%p1650) target = $region56
        $region55: #{tpu_custom_call.1} parent=51 // pred_region
          %s1653 = sand.u32 %s170, 1
          %s1654 = scalar_lea.sflag [#allocation3], %s1653
          %s1655 = sand.u32 %s170, 1
          %s1656 = scalar_lea.vmem [#allocation2], %s1655
          %1657 = dma.done %s1654, 16
        $region56: #{tpu_custom_call.1} parent=51 // pred_fallthru
          _
      $region52: #{tpu_custom_call.1} parent=5 // pred_fallthru
        _
    $region6: #{tpu_custom_call.1} parent=1 // loop_footer
      %s19 = sadd.s32 1, %s15
    $region7: #{tpu_custom_call.1} parent=1 // loop_footer_branch
      %14 = sbr.rel target = $region3
    $region8: #{tpu_custom_call.1} parent=1 // loop_exit
      _
    %1658 = vsyncpa [#allocation3], 1
    %s1659 = scalar_lea.sflag [#allocation3], 1
    %1660 = vsyncpa %s1659, 1

</llo_original>
